<compile_context>
chip_gen: v6e
topology: v6e:2x2x1
jax: 0.10.0
libtpu: 0.0.40
codegen_flags: <defaults>
</compile_context>

<pallas_src>
import jax
import jax.numpy as jnp
from jax import lax
from jax.experimental import pallas as pl
from jax.experimental.pallas import tpu as pltpu

_EPS = 1e-5
_VMEM_LIMIT = 48 * 1024 * 1024      # explicit scoped-VMEM budget (fits v5e/v6e/v7x)


# ---------------------------------------------------------------------------
# Kernel 1: conv3x3(stride) of relu(bn1(x)) with BN2 folded in (-> h),
#           plus shortcut conv1x1(stride) with BN3 folded in (-> s).
# ---------------------------------------------------------------------------
def _conv1_shortcut_kernel(p_ref, xs_ref, w1_ref, b1_ref, wsc_ref, bsc_ref,
                           h_ref, s_ref):
    acc = jnp.dot(p_ref[...], w1_ref[...], preferred_element_type=jnp.float32)
    h_ref[...] = jnp.maximum(acc + b1_ref[...], 0.0).astype(h_ref.dtype)
    s = jnp.dot(xs_ref[...], wsc_ref[...], preferred_element_type=jnp.float32)
    s_ref[...] = s + bsc_ref[...]


# ---------------------------------------------------------------------------
# Kernel 2: second conv3x3 + bias + shortcut add (z = conv2(h) + b2 + s), and a
#           per-batch sum(z) accumulated across the row-block (reduction) axis.
# ---------------------------------------------------------------------------
def _conv2_pool_kernel(p_ref, s_ref, w2_ref, b2_ref, z_ref, zsum_ref):
    z = jnp.dot(p_ref[...], w2_ref[...], preferred_element_type=jnp.float32)
    z = z + b2_ref[...] + s_ref[...]
    z_ref[...] = z
    part = jnp.sum(z, axis=0, keepdims=True)               # (1, Cout)

    r = pl.program_id(1)

    @pl.when(r == 0)
    def _():
        zsum_ref[...] = part

    @pl.when(r != 0)
    def _():
        zsum_ref[...] = zsum_ref[...] + part


# ---------------------------------------------------------------------------
# Kernel 3: apply the squeeze-excitation gate:  y = z * gate[batch]
# ---------------------------------------------------------------------------
def _se_gate_kernel(z_ref, g_ref, y_ref):
    y_ref[...] = z_ref[...] * g_ref[...]


# ---------------------------------------------------------------------------
# Plain-JAX glue
# ---------------------------------------------------------------------------
def _im2col_3x3(a, stride):
    """3x3 / pad=1 / `stride` taps of NHWC `a`, flattened to (B, Ho*Wo, 9*C)."""
    B, H, W, C = a.shape
    Ho = (H - 1) // stride + 1
    Wo = (W - 1) // stride + 1
    ap = jnp.pad(a, ((0, 0), (1, 1), (1, 1), (0, 0)))
    taps = []
    for dy in range(3):
        for dx in range(3):
            taps.append(ap[:, dy:dy + (Ho - 1) * stride + 1:stride,
                           dx:dx + (Wo - 1) * stride + 1:stride, :])
    p = jnp.stack(taps, axis=3)                             # (B, Ho, Wo, 9, C)
    return p.reshape(B, Ho * Wo, 9 * C)


def _pick_row_tile(n_rows, cap):
    """Largest multiple-of-8 divisor of n_rows that is <= cap (else full rows)."""
    t = min(cap, n_rows)
    t -= t % 8
    while t >= 8:
        if n_rows % t == 0:
            return t
        t -= 8
    return n_rows


def resnet_block_forward(x_nchw, params, stride=1, row_block=128):
    x = jnp.transpose(x_nchw, (0, 2, 3, 1)).astype(jnp.float32)     # NCHW -> NHWC
    B, H, W, Cin = x.shape
    Cout = params['w1'].shape[-1]
    Ho = (H - 1) // stride + 1
    Wo = (W - 1) // stride + 1
    N = Ho * Wo                                                     # rows per batch

    def bn_affine(bn):
        g, b, m, v = bn
        s = g / jnp.sqrt(v + _EPS)
        return s, b - m * s

    bn1_s, bn1_t = bn_affine(params['bn1'])
    bn2_s, bn2_t = bn_affine(params['bn2'])
    bn3_s, bn3_t = bn_affine(params['bn3'])

    # Prologue (once, not per-tap): BN1 + ReLU.  Zero-padding `a` afterwards is
    # exactly PyTorch's conv padding, so no (9, N, C) validity mask is needed.
    a = jnp.maximum(x * bn1_s + bn1_t, 0.0).astype(jnp.bfloat16)

    # Fold BN2 into conv1 and BN3 into the shortcut conv (eval-mode BN).
    w1f = (params['w1'].reshape(9 * Cin, Cout) * bn2_s[None, :]).astype(jnp.bfloat16)
    b1f = (params['b1'] * bn2_s + bn2_t).reshape(1, Cout)
    wscf = (params['wsc'] * bn3_s[None, :]).astype(jnp.bfloat16)
    bscf = (params['bsc'] * bn3_s + bn3_t).reshape(1, Cout)
    w2f = params['w2'].reshape(9 * Cout, Cout).astype(jnp.bfloat16)
    b2f = params['b2'].reshape(1, Cout)

    patches1 = _im2col_3x3(a, stride)                               # (B, N, 9*Cin) bf16
    xs = x[:, ::stride, ::stride, :][:, :Ho, :Wo, :]
    xs = xs.astype(jnp.bfloat16).reshape(B, N, Cin)                 # (B, N, Cin)  bf16

    tile = _pick_row_tile(N, row_block)
    grid = (B, N // tile)

    def row_spec(feat):
        return pl.BlockSpec((None, tile, feat), lambda b, r: (b, r, 0))

    def full_spec(shape):
        return pl.BlockSpec(shape, lambda b, r: (0, 0))

    # ---- kernel 1: conv1 (+BN2+ReLU folded) and shortcut (+BN3 folded) -------
    h, sbr = pl.pallas_call(
        _conv1_shortcut_kernel,
        out_shape=(jax.ShapeDtypeStruct((B, N, Cout), jnp.bfloat16),
                   jax.ShapeDtypeStruct((B, N, Cout), jnp.float32)),
        grid=grid,
        in_specs=[row_spec(9 * Cin), row_spec(Cin),
                  full_spec((9 * Cin, Cout)), full_spec((1, Cout)),
                  full_spec((Cin, Cout)), full_spec((1, Cout))],
        out_specs=(row_spec(Cout), row_spec(Cout)),
        compiler_params=pltpu.CompilerParams(
            dimension_semantics=("parallel", "parallel"),
            vmem_limit_bytes=_VMEM_LIMIT),
    )(patches1, xs, w1f, b1f, wscf, bscf)

    # TODO(synk): halo-read h inside kernel 2 (overlapping row blocks / manual DMA)
    # instead of materializing the 9-tap im2col, to cut conv2 input HBM reads ~9x.
    patches2 = _im2col_3x3(h.reshape(B, Ho, Wo, Cout), 1)           # (B, N, 9*Cout) bf16

    # ---- kernel 2: conv2 + shortcut add, with per-batch pooled-sum reduction --
    z, zsum = pl.pallas_call(
        _conv2_pool_kernel,
        out_shape=(jax.ShapeDtypeStruct((B, N, Cout), jnp.float32),
                   jax.ShapeDtypeStruct((B, 1, Cout), jnp.float32)),
        grid=grid,
        in_specs=[row_spec(9 * Cout), row_spec(Cout),
                  full_spec((9 * Cout, Cout)), full_spec((1, Cout))],
        out_specs=(row_spec(Cout),
                   pl.BlockSpec((None, 1, Cout), lambda b, r: (b, 0, 0))),
        compiler_params=pltpu.CompilerParams(
            dimension_semantics=("parallel", "arbitrary"),  # axis 1 = reduction axis
            vmem_limit_bytes=_VMEM_LIMIT),
    )(patches2, sbr, w2f, b2f)

    # ---- Squeeze-Excitation MLP on the tiny (B, Cout) pooled vector (JAX) -----
    pooled = zsum[:, 0, :] / float(N)
    gate = jax.nn.sigmoid(jax.nn.relu(pooled @ params['se_w1']) @ params['se_w2'])
    gate = gate.astype(jnp.float32)[:, None, :]                     # (B, 1, Cout)

    # ---- kernel 3: apply the gate per batch -----------------------------------
    y = pl.pallas_call(
        _se_gate_kernel,
        out_shape=jax.ShapeDtypeStruct((B, N, Cout), jnp.float32),
        grid=grid,
        in_specs=[row_spec(Cout),
                  pl.BlockSpec((None, 1, Cout), lambda b, r: (b, 0, 0))],
        out_specs=row_spec(Cout),
        compiler_params=pltpu.CompilerParams(
            dimension_semantics=("parallel", "parallel"),
            vmem_limit_bytes=_VMEM_LIMIT),
    )(z, gate)

    return jnp.transpose(y.reshape(B, Ho, Wo, Cout), (0, 3, 1, 2))  # NHWC -> NCHW


# ---------------------------------------------------------------------------
# Deterministic parameter init (synthetic; shapes follow the nn.Module __init__)
# ---------------------------------------------------------------------------
def init_params(key, in_c, out_c, r=8):
    ks = jax.random.split(key, 20)

    def nrm(k, shape, scale=0.1):
        return scale * jax.random.normal(k, shape, jnp.float32)

    def bn(k0, k1, k2, k3, c):  # gamma, beta, running_mean, running_var (eval mode)
        return (1.0 + 0.1 * jax.random.normal(k0, (c,), jnp.float32),
                0.1 * jax.random.normal(k1, (c,), jnp.float32),
                0.1 * jax.random.normal(k2, (c,), jnp.float32),
                1.0 + 0.2 * jnp.abs(jax.random.normal(k3, (c,), jnp.float32)))

    cr = max(out_c // r, 1)
    return {
        'w1': nrm(ks[0], (9, in_c, out_c)),       # conv3x3 #1, tap-major (dy*3+dx, Cin, Cout)
        'b1': nrm(ks[1], (out_c,)),
        'w2': nrm(ks[2], (9, out_c, out_c)),      # conv3x3 #2
        'b2': nrm(ks[3], (out_c,)),
        'wsc': nrm(ks[4], (in_c, out_c)),         # shortcut conv1x1
        'bsc': nrm(ks[5], (out_c,)),
        'bn1': bn(ks[6], ks[7], ks[8], ks[9], in_c),
        'bn2': bn(ks[10], ks[11], ks[12], ks[13], out_c),
        'bn3': bn(ks[14], ks[15], ks[16], ks[17], out_c),
        'se_w1': nrm(ks[18], (out_c, cr), 0.3),   # Linear(C, C//r, bias=False) as x @ W
        'se_w2': nrm(ks[19], (cr, out_c), 0.3),   # Linear(C//r, C, bias=False)
    }


# ---------------------------------------------------------------------------
# Pure-JAX reference (correctness check only, full f32)
# ---------------------------------------------------------------------------
def reference_forward(x_nchw, p, stride=1):
    def bn(x, bnp):
        g, b, m, v = bnp
        s = g / jnp.sqrt(v + _EPS)
        return x * s[None, :, None, None] + (b - m * s)[None, :, None, None]

    def conv3(x, w9, bias, st):
        cin, cout = w9.shape[1], w9.shape[2]
        w = jnp.transpose(w9.reshape(3, 3, cin, cout), (3, 2, 0, 1))  # OIHW
        y = lax.conv_general_dilated(x, w, (st, st), ((1, 1), (1, 1)),
                                     dimension_numbers=('NCHW', 'OIHW', 'NCHW'),
                                     precision=lax.Precision.HIGHEST)
        return y + bias.reshape(1, -1, 1, 1)

    def conv1(x, w, bias, st):
        wo = jnp.transpose(w, (1, 0))[:, :, None, None]
        y = lax.conv_general_dilated(x, wo, (st, st), ((0, 0), (0, 0)),
                                     dimension_numbers=('NCHW', 'OIHW', 'NCHW'),
                                     precision=lax.Precision.HIGHEST)
        return y + bias.reshape(1, -1, 1, 1)

    a = jax.nn.relu(bn(x_nchw, p['bn1']))
    h = conv3(a, p['w1'], p['b1'], stride)
    h = jax.nn.relu(bn(h, p['bn2']))
    h = conv3(h, p['w2'], p['b2'], 1)
    s = bn(conv1(x_nchw, p['wsc'], p['bsc'], stride), p['bn3'])
    z = h + s
    pooled = jnp.mean(z, axis=(2, 3))
    hid = jax.nn.relu(pooled @ p['se_w1'])
    gate = jax.nn.sigmoid(hid @ p['se_w2'])
    return z * gate[:, :, None, None]


if __name__ == "__main__":
    key = jax.random.PRNGKey(0)
    kx, kp = jax.random.split(key)
    B, Cin, H, W = 2, 4, 16, 16
    Cout, stride = 8, 1          # out_c=8 so SE hidden = out_c // 8 = 1
    x = jax.random.normal(kx, (B, Cin, H, W), jnp.float32)
    params = init_params(kp, Cin, Cout)

    fwd = jax.jit(lambda xx, pp: resnet_block_forward(xx, pp, stride=stride))
    y = jax.block_until_ready(fwd(x, params))

    assert y.shape == (B, Cout, H, W), y.shape
    y_ref = reference_forward(x, params, stride=stride)
    err = float(jnp.max(jnp.abs(y - y_ref)))
    # bf16 matmul inputs (f32 accumulation) vs. a pure-f32 reference.
    assert err < 3e-2, f"max abs diff vs reference: {err}"
    print("KERNEL_OK")
</pallas_src>

<mosaic_0001>
module attributes {stable_mosaic.version = 11 : i64} {
  func.func @_conv1_shortcut_kernel(%arg0: i32, %arg1: i32, %arg2: memref<1x128x36xbf16, #tpu.memory_space<vmem>>, %arg3: memref<1x128x4xbf16, #tpu.memory_space<vmem>>, %arg4: memref<36x8xbf16, #tpu.memory_space<vmem>>, %arg5: memref<1x8xf32, #tpu.memory_space<vmem>>, %arg6: memref<4x8xbf16, #tpu.memory_space<vmem>>, %arg7: memref<1x8xf32, #tpu.memory_space<vmem>>, %arg8: memref<1x128x8xbf16, #tpu.memory_space<vmem>>, %arg9: memref<1x128x8xf32, #tpu.memory_space<vmem>>) attributes {dimension_semantics = [#tpu.dimension_semantics<parallel>, #tpu.dimension_semantics<parallel>], iteration_bounds = array<i64: 2, 2>, scalar_prefetch = 0 : i64, scratch_operands = 0 : i64, tpu.core_type = #tpu.core_type<tc>, window_params = [{transform_indices = @transform_0, window_bounds = array<i64: 1, 128, 36>}, {transform_indices = @transform_1, window_bounds = array<i64: 1, 128, 4>}, {pipeline_mode = #tpu.pipeline_mode<synchronous>, transform_indices = @transform_2, window_bounds = array<i64: 36, 8>}, {pipeline_mode = #tpu.pipeline_mode<synchronous>, transform_indices = @transform_3, window_bounds = array<i64: 1, 8>}, {pipeline_mode = #tpu.pipeline_mode<synchronous>, transform_indices = @transform_4, window_bounds = array<i64: 4, 8>}, {pipeline_mode = #tpu.pipeline_mode<synchronous>, transform_indices = @transform_5, window_bounds = array<i64: 1, 8>}, {transform_indices = @transform_6, window_bounds = array<i64: 1, 128, 8>}, {transform_indices = @transform_7, window_bounds = array<i64: 1, 128, 8>}]} {
    %c0 = arith.constant 0 : index
    %c0_0 = arith.constant 0 : index
    %c0_1 = arith.constant 0 : index
    %0 = vector.load %arg2[%c0, %c0_0, %c0_1] : memref<1x128x36xbf16, #tpu.memory_space<vmem>>, vector<1x128x36xbf16>
    %1 = vector.shape_cast %0 : vector<1x128x36xbf16> to vector<128x36xbf16>
    %c0_2 = arith.constant 0 : index
    %c0_3 = arith.constant 0 : index
    %2 = vector.load %arg4[%c0_2, %c0_3] : memref<36x8xbf16, #tpu.memory_space<vmem>>, vector<36x8xbf16>
    %cst = arith.constant dense<0.000000e+00> : vector<128x8xf32>
    %3 = tpu.matmul %1, %2, %cst {dimension_numbers = #tpu.dot_dimension_numbers<[1], [0], [0], [1], [0, 0, 1, 1], [], []>} : vector<128x36xbf16>, vector<36x8xbf16>, vector<128x8xf32> -> vector<128x8xf32>
    %c0_4 = arith.constant 0 : index
    %c0_5 = arith.constant 0 : index
    %4 = vector.load %arg5[%c0_4, %c0_5] : memref<1x8xf32, #tpu.memory_space<vmem>>, vector<1x8xf32>
    %5 = vector.broadcast %4 : vector<1x8xf32> to vector<128x8xf32>
    %6 = arith.addf %3, %5 : vector<128x8xf32>
    %cst_6 = arith.constant 0.000000e+00 : f32
    %7 = vector.broadcast %cst_6 : f32 to vector<128x8xf32>
    %8 = arith.maximumf %6, %7 : vector<128x8xf32>
    %9 = arith.truncf %8 : vector<128x8xf32> to vector<128x8xbf16>
    %c0_7 = arith.constant 0 : index
    %c0_8 = arith.constant 0 : index
    %c0_9 = arith.constant 0 : index
    %10 = vector.load %arg8[%c0_7, %c0_8, %c0_9] : memref<1x128x8xbf16, #tpu.memory_space<vmem>>, vector<1x128x8xbf16>
    %11 = vector.shape_cast %10 : vector<1x128x8xbf16> to vector<128x8xbf16>
    %12 = vector.shape_cast %9 : vector<128x8xbf16> to vector<1x128x8xbf16>
    tpu.vector_store %arg8[%c0_7, %c0_8, %c0_9], %12 {strides = array<i32>} : memref<1x128x8xbf16, #tpu.memory_space<vmem>>, vector<1x128x8xbf16>,
    %c0_10 = arith.constant 0 : index
    %c0_11 = arith.constant 0 : index
    %c0_12 = arith.constant 0 : index
    %13 = vector.load %arg3[%c0_10, %c0_11, %c0_12] : memref<1x128x4xbf16, #tpu.memory_space<vmem>>, vector<1x128x4xbf16>
    %14 = vector.shape_cast %13 : vector<1x128x4xbf16> to vector<128x4xbf16>
    %c0_13 = arith.constant 0 : index
    %c0_14 = arith.constant 0 : index
    %15 = vector.load %arg6[%c0_13, %c0_14] : memref<4x8xbf16, #tpu.memory_space<vmem>>, vector<4x8xbf16>
    %cst_15 = arith.constant dense<0.000000e+00> : vector<128x8xf32>
    %16 = tpu.matmul %14, %15, %cst_15 {dimension_numbers = #tpu.dot_dimension_numbers<[1], [0], [0], [1], [0, 0, 1, 1], [], []>} : vector<128x4xbf16>, vector<4x8xbf16>, vector<128x8xf32> -> vector<128x8xf32>
    %c0_16 = arith.constant 0 : index
    %c0_17 = arith.constant 0 : index
    %17 = vector.load %arg7[%c0_16, %c0_17] : memref<1x8xf32, #tpu.memory_space<vmem>>, vector<1x8xf32>
    %18 = vector.broadcast %17 : vector<1x8xf32> to vector<128x8xf32>
    %19 = arith.addf %16, %18 : vector<128x8xf32>
    %c0_18 = arith.constant 0 : index
    %c0_19 = arith.constant 0 : index
    %c0_20 = arith.constant 0 : index
    %20 = vector.load %arg9[%c0_18, %c0_19, %c0_20] : memref<1x128x8xf32, #tpu.memory_space<vmem>>, vector<1x128x8xf32>
    %21 = vector.shape_cast %20 : vector<1x128x8xf32> to vector<128x8xf32>
    %22 = vector.shape_cast %19 : vector<128x8xf32> to vector<1x128x8xf32>
    tpu.vector_store %arg9[%c0_18, %c0_19, %c0_20], %22 {strides = array<i32>} : memref<1x128x8xf32, #tpu.memory_space<vmem>>, vector<1x128x8xf32>,
    return
  }
  func.func @transform_0(%arg0: i32, %arg1: i32) -> (i32, i32, i32) {
    %c0_i32 = arith.constant 0 : i32
    %c0_i32_0 = arith.constant 0 : i32
    return %arg0, %arg1, %c0_i32 : i32, i32, i32
  }
  func.func @transform_1(%arg0: i32, %arg1: i32) -> (i32, i32, i32) {
    %c0_i32 = arith.constant 0 : i32
    %c0_i32_0 = arith.constant 0 : i32
    return %arg0, %arg1, %c0_i32 : i32, i32, i32
  }
  func.func @transform_2(%arg0: i32, %arg1: i32) -> (i32, i32) {
    %c0_i32 = arith.constant 0 : i32
    %c0_i32_0 = arith.constant 0 : i32
    %c0_i32_1 = arith.constant 0 : i32
    return %c0_i32, %c0_i32_0 : i32, i32
  }
  func.func @transform_3(%arg0: i32, %arg1: i32) -> (i32, i32) {
    %c0_i32 = arith.constant 0 : i32
    %c0_i32_0 = arith.constant 0 : i32
    %c0_i32_1 = arith.constant 0 : i32
    return %c0_i32, %c0_i32_0 : i32, i32
  }
  func.func @transform_4(%arg0: i32, %arg1: i32) -> (i32, i32) {
    %c0_i32 = arith.constant 0 : i32
    %c0_i32_0 = arith.constant 0 : i32
    %c0_i32_1 = arith.constant 0 : i32
    return %c0_i32, %c0_i32_0 : i32, i32
  }
  func.func @transform_5(%arg0: i32, %arg1: i32) -> (i32, i32) {
    %c0_i32 = arith.constant 0 : i32
    %c0_i32_0 = arith.constant 0 : i32
    %c0_i32_1 = arith.constant 0 : i32
    return %c0_i32, %c0_i32_0 : i32, i32
  }
  func.func @transform_6(%arg0: i32, %arg1: i32) -> (i32, i32, i32) {
    %c0_i32 = arith.constant 0 : i32
    %c0_i32_0 = arith.constant 0 : i32
    return %arg0, %arg1, %c0_i32 : i32, i32, i32
  }
  func.func @transform_7(%arg0: i32, %arg1: i32) -> (i32, i32, i32) {
    %c0_i32 = arith.constant 0 : i32
    %c0_i32_0 = arith.constant 0 : i32
    return %arg0, %arg1, %c0_i32 : i32, i32, i32
  }
}

module attributes {stable_mosaic.version = 11 : i64} {
  func.func @_conv2_pool_kernel(%arg0: i32, %arg1: i32, %arg2: memref<1x128x72xbf16, #tpu.memory_space<vmem>>, %arg3: memref<1x128x8xf32, #tpu.memory_space<vmem>>, %arg4: memref<72x8xbf16, #tpu.memory_space<vmem>>, %arg5: memref<1x8xf32, #tpu.memory_space<vmem>>, %arg6: memref<1x128x8xf32, #tpu.memory_space<vmem>>, %arg7: memref<1x1x8xf32, #tpu.memory_space<vmem>>) attributes {dimension_semantics = [#tpu.dimension_semantics<parallel>, #tpu.dimension_semantics<arbitrary>], iteration_bounds = array<i64: 2, 2>, scalar_prefetch = 0 : i64, scratch_operands = 0 : i64, tpu.core_type = #tpu.core_type<tc>, window_params = [{transform_indices = @transform_0, window_bounds = array<i64: 1, 128, 72>}, {transform_indices = @transform_1, window_bounds = array<i64: 1, 128, 8>}, {pipeline_mode = #tpu.pipeline_mode<synchronous>, transform_indices = @transform_2, window_bounds = array<i64: 72, 8>}, {pipeline_mode = #tpu.pipeline_mode<synchronous>, transform_indices = @transform_3, window_bounds = array<i64: 1, 8>}, {transform_indices = @transform_4, window_bounds = array<i64: 1, 128, 8>}, {transform_indices = @transform_5, window_bounds = array<i64: 1, 1, 8>}]} {
    %c0 = arith.constant 0 : index
    %c0_0 = arith.constant 0 : index
    %c0_1 = arith.constant 0 : index
    %0 = vector.load %arg2[%c0, %c0_0, %c0_1] : memref<1x128x72xbf16, #tpu.memory_space<vmem>>, vector<1x128x72xbf16>
    %1 = vector.shape_cast %0 : vector<1x128x72xbf16> to vector<128x72xbf16>
    %c0_2 = arith.constant 0 : index
    %c0_3 = arith.constant 0 : index
    %2 = vector.load %arg4[%c0_2, %c0_3] : memref<72x8xbf16, #tpu.memory_space<vmem>>, vector<72x8xbf16>
    %cst = arith.constant dense<0.000000e+00> : vector<128x8xf32>
    %3 = tpu.matmul %1, %2, %cst {dimension_numbers = #tpu.dot_dimension_numbers<[1], [0], [0], [1], [0, 0, 1, 1], [], []>} : vector<128x72xbf16>, vector<72x8xbf16>, vector<128x8xf32> -> vector<128x8xf32>
    %c0_4 = arith.constant 0 : index
    %c0_5 = arith.constant 0 : index
    %4 = vector.load %arg5[%c0_4, %c0_5] : memref<1x8xf32, #tpu.memory_space<vmem>>, vector<1x8xf32>
    %5 = vector.broadcast %4 : vector<1x8xf32> to vector<128x8xf32>
    %6 = arith.addf %3, %5 : vector<128x8xf32>
    %c0_6 = arith.constant 0 : index
    %c0_7 = arith.constant 0 : index
    %c0_8 = arith.constant 0 : index
    %7 = vector.load %arg3[%c0_6, %c0_7, %c0_8] : memref<1x128x8xf32, #tpu.memory_space<vmem>>, vector<1x128x8xf32>
    %8 = vector.shape_cast %7 : vector<1x128x8xf32> to vector<128x8xf32>
    %9 = arith.addf %6, %8 : vector<128x8xf32>
    %c0_9 = arith.constant 0 : index
    %c0_10 = arith.constant 0 : index
    %c0_11 = arith.constant 0 : index
    %10 = vector.load %arg6[%c0_9, %c0_10, %c0_11] : memref<1x128x8xf32, #tpu.memory_space<vmem>>, vector<1x128x8xf32>
    %11 = vector.shape_cast %10 : vector<1x128x8xf32> to vector<128x8xf32>
    %12 = vector.shape_cast %9 : vector<128x8xf32> to vector<1x128x8xf32>
    tpu.vector_store %arg6[%c0_9, %c0_10, %c0_11], %12 {strides = array<i32>} : memref<1x128x8xf32, #tpu.memory_space<vmem>>, vector<1x128x8xf32>,
    %cst_12 = arith.constant dense<0.000000e+00> : vector<8xf32>
    %13 = vector.multi_reduction <add>, %9, %cst_12 [0] : vector<128x8xf32> to vector<8xf32>
    %14 = vector.shape_cast %13 : vector<8xf32> to vector<1x8xf32>
    %c0_i32 = arith.constant 0 : i32
    %15 = arith.cmpi eq, %arg1, %c0_i32 : i32
    %16 = arith.extui %15 : i1 to i32
    %c0_i32_13 = arith.constant 0 : i32
    %17 = arith.cmpi ne, %16, %c0_i32_13 : i32
    scf.if %17 {
      %c0_16 = arith.constant 0 : index
      %c0_17 = arith.constant 0 : index
      %c0_18 = arith.constant 0 : index
      %21 = vector.load %arg7[%c0_16, %c0_17, %c0_18] : memref<1x1x8xf32, #tpu.memory_space<vmem>>, vector<1x1x8xf32>
      %22 = vector.shape_cast %21 : vector<1x1x8xf32> to vector<1x8xf32>
      %23 = vector.shape_cast %14 : vector<1x8xf32> to vector<1x1x8xf32>
      tpu.vector_store %arg7[%c0_16, %c0_17, %c0_18], %23 {strides = array<i32>} : memref<1x1x8xf32, #tpu.memory_space<vmem>>, vector<1x1x8xf32>,
    } else {
    }
    %c0_i32_14 = arith.constant 0 : i32
    %18 = arith.cmpi ne, %arg1, %c0_i32_14 : i32
    %19 = arith.extui %18 : i1 to i32
    %c0_i32_15 = arith.constant 0 : i32
    %20 = arith.cmpi ne, %19, %c0_i32_15 : i32
    scf.if %20 {
      %c0_16 = arith.constant 0 : index
      %c0_17 = arith.constant 0 : index
      %c0_18 = arith.constant 0 : index
      %21 = vector.load %arg7[%c0_16, %c0_17, %c0_18] : memref<1x1x8xf32, #tpu.memory_space<vmem>>, vector<1x1x8xf32>
      %22 = vector.shape_cast %21 : vector<1x1x8xf32> to vector<1x8xf32>
      %23 = arith.addf %22, %14 : vector<1x8xf32>
      %c0_19 = arith.constant 0 : index
      %c0_20 = arith.constant 0 : index
      %c0_21 = arith.constant 0 : index
      %24 = vector.load %arg7[%c0_19, %c0_20, %c0_21] : memref<1x1x8xf32, #tpu.memory_space<vmem>>, vector<1x1x8xf32>
      %25 = vector.shape_cast %24 : vector<1x1x8xf32> to vector<1x8xf32>
      %26 = vector.shape_cast %23 : vector<1x8xf32> to vector<1x1x8xf32>
      tpu.vector_store %arg7[%c0_19, %c0_20, %c0_21], %26 {strides = array<i32>} : memref<1x1x8xf32, #tpu.memory_space<vmem>>, vector<1x1x8xf32>,
    } else {
    }
    return
  }
  func.func @transform_0(%arg0: i32, %arg1: i32) -> (i32, i32, i32) {
    %c0_i32 = arith.constant 0 : i32
    %c0_i32_0 = arith.constant 0 : i32
    return %arg0, %arg1, %c0_i32 : i32, i32, i32
  }
  func.func @transform_1(%arg0: i32, %arg1: i32) -> (i32, i32, i32) {
    %c0_i32 = arith.constant 0 : i32
    %c0_i32_0 = arith.constant 0 : i32
    return %arg0, %arg1, %c0_i32 : i32, i32, i32
  }
  func.func @transform_2(%arg0: i32, %arg1: i32) -> (i32, i32) {
    %c0_i32 = arith.constant 0 : i32
    %c0_i32_0 = arith.constant 0 : i32
    %c0_i32_1 = arith.constant 0 : i32
    return %c0_i32, %c0_i32_0 : i32, i32
  }
  func.func @transform_3(%arg0: i32, %arg1: i32) -> (i32, i32) {
    %c0_i32 = arith.constant 0 : i32
    %c0_i32_0 = arith.constant 0 : i32
    %c0_i32_1 = arith.constant 0 : i32
    return %c0_i32, %c0_i32_0 : i32, i32
  }
  func.func @transform_4(%arg0: i32, %arg1: i32) -> (i32, i32, i32) {
    %c0_i32 = arith.constant 0 : i32
    %c0_i32_0 = arith.constant 0 : i32
    return %arg0, %arg1, %c0_i32 : i32, i32, i32
  }
  func.func @transform_5(%arg0: i32, %arg1: i32) -> (i32, i32, i32) {
    %c0_i32 = arith.constant 0 : i32
    %c0_i32_0 = arith.constant 0 : i32
    %c0_i32_1 = arith.constant 0 : i32
    return %arg0, %c0_i32, %c0_i32_0 : i32, i32, i32
  }
}

module attributes {stable_mosaic.version = 11 : i64} {
  func.func @_se_gate_kernel(%arg0: i32, %arg1: i32, %arg2: memref<1x128x8xf32, #tpu.memory_space<vmem>>, %arg3: memref<1x1x8xf32, #tpu.memory_space<vmem>>, %arg4: memref<1x128x8xf32, #tpu.memory_space<vmem>>) attributes {dimension_semantics = [#tpu.dimension_semantics<parallel>, #tpu.dimension_semantics<parallel>], iteration_bounds = array<i64: 2, 2>, scalar_prefetch = 0 : i64, scratch_operands = 0 : i64, tpu.core_type = #tpu.core_type<tc>, window_params = [{transform_indices = @transform_0, window_bounds = array<i64: 1, 128, 8>}, {transform_indices = @transform_1, window_bounds = array<i64: 1, 1, 8>}, {transform_indices = @transform_2, window_bounds = array<i64: 1, 128, 8>}]} {
    %c0 = arith.constant 0 : index
    %c0_0 = arith.constant 0 : index
    %c0_1 = arith.constant 0 : index
    %0 = vector.load %arg2[%c0, %c0_0, %c0_1] : memref<1x128x8xf32, #tpu.memory_space<vmem>>, vector<1x128x8xf32>
    %1 = vector.shape_cast %0 : vector<1x128x8xf32> to vector<128x8xf32>
    %c0_2 = arith.constant 0 : index
    %c0_3 = arith.constant 0 : index
    %c0_4 = arith.constant 0 : index
    %2 = vector.load %arg3[%c0_2, %c0_3, %c0_4] : memref<1x1x8xf32, #tpu.memory_space<vmem>>, vector<1x1x8xf32>
    %3 = vector.shape_cast %2 : vector<1x1x8xf32> to vector<1x8xf32>
    %4 = vector.broadcast %3 : vector<1x8xf32> to vector<128x8xf32>
    %5 = arith.mulf %1, %4 : vector<128x8xf32>
    %c0_5 = arith.constant 0 : index
    %c0_6 = arith.constant 0 : index
    %c0_7 = arith.constant 0 : index
    %6 = vector.load %arg4[%c0_5, %c0_6, %c0_7] : memref<1x128x8xf32, #tpu.memory_space<vmem>>, vector<1x128x8xf32>
    %7 = vector.shape_cast %6 : vector<1x128x8xf32> to vector<128x8xf32>
    %8 = vector.shape_cast %5 : vector<128x8xf32> to vector<1x128x8xf32>
    tpu.vector_store %arg4[%c0_5, %c0_6, %c0_7], %8 {strides = array<i32>} : memref<1x128x8xf32, #tpu.memory_space<vmem>>, vector<1x128x8xf32>,
    return
  }
  func.func @transform_0(%arg0: i32, %arg1: i32) -> (i32, i32, i32) {
    %c0_i32 = arith.constant 0 : i32
    %c0_i32_0 = arith.constant 0 : i32
    return %arg0, %arg1, %c0_i32 : i32, i32, i32
  }
  func.func @transform_1(%arg0: i32, %arg1: i32) -> (i32, i32, i32) {
    %c0_i32 = arith.constant 0 : i32
    %c0_i32_0 = arith.constant 0 : i32
    %c0_i32_1 = arith.constant 0 : i32
    return %arg0, %c0_i32, %c0_i32_0 : i32, i32, i32
  }
  func.func @transform_2(%arg0: i32, %arg1: i32) -> (i32, i32, i32) {
    %c0_i32 = arith.constant 0 : i32
    %c0_i32_0 = arith.constant 0 : i32
    return %arg0, %arg1, %c0_i32 : i32, i32, i32
  }
}

</mosaic_0001>

<llo_original>
// kernel: _lambda_.3
$region0: #{_lambda_.3}
  #allocation0 [shape = 'u32[]', space=smem, size = 0x4, offset = 0x4, fixed_abs, tag = 'smem constant byte address 0x4 - core index']
  #allocation1 [shape = 'u32[144,128]{1,0:T(1,128)}', space=vmem, size = 0x12000, scoped, tag = 'internal scratch']
  %s0 = inlined_call_operand.vmem [shape: bf16[2,256,36], index: 0, kind: input, shape index: {}]
  %s1 = inlined_call_operand.vmem [shape: bf16[2,256,4], index: 1, kind: input, shape index: {}]
  %s2 = inlined_call_operand.vmem [shape: bf16[36,8], index: 2, kind: input, shape index: {}]
  %s3 = inlined_call_operand.vmem [shape: f32[1,8], index: 3, kind: input, shape index: {}]
  %s4 = inlined_call_operand.vmem [shape: bf16[4,8], index: 4, kind: input, shape index: {}]
  %s5 = inlined_call_operand.vmem [shape: f32[1,8], index: 5, kind: input, shape index: {}]
  %s6 = inlined_call_operand.vmem [shape: bf16[2,256,8], index: 6, kind: output, shape index: {0}]
  %s7 = inlined_call_operand.vmem [shape: f32[2,256,8], index: 7, kind: output, shape index: {1}]
  %8 = xla_tuple %s6, %s7
  %s9 = sld [smem:[#allocation0]]
  $region65: #{_lambda_.3} parent=0
    _
  %s11 = ssub.s32 1, %s9
  %s12 = scalar_select 0, %s11, %s9
  loop: start=0, step=1, limit=6
  $region2: #{_lambda_.3} parent=0 // loop_pre_header
    _
  $region3: #{_lambda_.3} parent=0 // loop_header
    %s14 = sphi 0, %s18
    %p15 = scmp.ge.s32.totalorder %s14, 6
    %s21 = sphi 0, %s33
    %s22 = sphi 0, %s29
    %s23 = sphi 0, %s21
    %s24 = sphi 0, %s22
    %s25 = sphi 0, %s23
    %s26 = sphi 0, %s24
    %s38 = sphi 0, %s40
    %s41 = sphi 0, %s38
    %s42 = sphi 0, %s41
    %s58 = sphi 0, %s42
    %s66 = sphi 0, %s68
    %s69 = sphi 0, %s66
    %s70 = sphi 0, %s69
    %s86 = sphi 0, %s70
    %s90 = sphi 0, %s90
    %s92 = sphi 0, %s90
    %s93 = sphi 0, %s92
    %s107 = sphi 0, %s93
    %s111 = sphi 0, %s111
    %s113 = sphi 0, %s111
    %s114 = sphi 0, %s113
    %s128 = sphi 0, %s114
    %s132 = sphi 0, %s132
    %s134 = sphi 0, %s132
    %s135 = sphi 0, %s134
    %s149 = sphi 0, %s135
    %s153 = sphi 0, %s153
    %s155 = sphi 0, %s153
    %s156 = sphi 0, %s155
    %s170 = sphi 0, %s156
    %s178 = sphi 0, %s180
    %s181 = sphi 0, %s178
    %s182 = sphi 0, %s181
    %s198 = sphi 0, %s182
    %s206 = sphi 0, %s208
    %s209 = sphi 0, %s206
    %s210 = sphi 0, %s209
    %s226 = sphi 0, %s210
  $region4: #{_lambda_.3} parent=0 // loop_header_branch
    %17 = sbr.rel (%p15) target = $region8
  $region5: #{_lambda_.3} parent=0 // loop_body
    %s19 = ssub.s32 %s14, 1
    %s20 = ssub.s32 %s14, 2
    %s27 = sadd.s32 1, %s22
    %p28 = scmp.ge.s32.totalorder %s27, 2
    %s29 = scalar_select %p28, 0, %s27
    %s30 = sadd.s32 1, %s21
    %s31 = scalar_select %p28, %s30, %s21
    %p32 = scmp.ge.s32.totalorder %s31, 2
    %s33 = scalar_select %p32, 0, %s31
    %s34 = ssub.s32 %s21, %s33
    %s35 = ssub.s32 %s22, %s29
    %s36 = sor.u32 %s34, %s35
    %p37 = scmp.eq.s32.totalorder %s36, 0
    %s39 = sadd.s32 %s38, 1
    %s40 = scalar_select %p37, %s38, %s39
    %p43 = pneg %p37
    %p44 = scmp.eq.s32.totalorder %s14, 3
    %p45 = por %p43, %p44
    %p46 = scmp.ne.s32.totalorder %s38, %s41
    %p47 = scmp.eq.s32.totalorder %s14, 0
    %p48 = por %p46, %p47
    %p49 = scmp.ne.s32.totalorder %s38, %s41
    %p50 = scmp.eq.s32.totalorder %s19, 3
    %p51 = por %p49, %p50
    %p52 = scmp.ne.s32.totalorder %s41, %s42
    %p53 = scmp.eq.s32.totalorder %s19, 0
    %p54 = por %p52, %p53
    %p55 = scmp.ne.s32.totalorder %s41, %s42
    %p56 = scmp.eq.s32.totalorder %s20, 3
    %p57 = por %p55, %p56
    %p59 = scmp.ne.s32.totalorder %s42, %s58
    %p60 = scmp.eq.s32.totalorder %s20, 0
    %p61 = por %p59, %p60
    %s62 = ssub.s32 %s21, %s33
    %s63 = ssub.s32 %s22, %s29
    %s64 = sor.u32 %s62, %s63
    %p65 = scmp.eq.s32.totalorder %s64, 0
    %s67 = sadd.s32 %s66, 1
    %s68 = scalar_select %p65, %s66, %s67
    %p71 = pneg %p65
    %p72 = scmp.eq.s32.totalorder %s14, 3
    %p73 = por %p71, %p72
    %p74 = scmp.ne.s32.totalorder %s66, %s69
    %p75 = scmp.eq.s32.totalorder %s14, 0
    %p76 = por %p74, %p75
    %p77 = scmp.ne.s32.totalorder %s66, %s69
    %p78 = scmp.eq.s32.totalorder %s19, 3
    %p79 = por %p77, %p78
    %p80 = scmp.ne.s32.totalorder %s69, %s70
    %p81 = scmp.eq.s32.totalorder %s19, 0
    %p82 = por %p80, %p81
    %p83 = scmp.ne.s32.totalorder %s69, %s70
    %p84 = scmp.eq.s32.totalorder %s20, 3
    %p85 = por %p83, %p84
    %p87 = scmp.ne.s32.totalorder %s70, %s86
    %p88 = scmp.eq.s32.totalorder %s20, 0
    %p89 = por %p87, %p88
    %s91 = sadd.s32 %s90, 1
    %p94 = scmp.eq.s32.totalorder %s14, 3
    %p95 = scmp.ne.s32.totalorder %s90, %s92
    %p96 = scmp.eq.s32.totalorder %s14, 0
    %p97 = por %p95, %p96
    %p98 = scmp.ne.s32.totalorder %s90, %s92
    %p99 = scmp.eq.s32.totalorder %s19, 3
    %p100 = por %p98, %p99
    %p101 = scmp.ne.s32.totalorder %s92, %s93
    %p102 = scmp.eq.s32.totalorder %s19, 0
    %p103 = por %p101, %p102
    %p104 = scmp.ne.s32.totalorder %s92, %s93
    %p105 = scmp.eq.s32.totalorder %s20, 3
    %p106 = por %p104, %p105
    %p108 = scmp.ne.s32.totalorder %s93, %s107
    %p109 = scmp.eq.s32.totalorder %s20, 0
    %p110 = por %p108, %p109
    %s112 = sadd.s32 %s111, 1
    %p115 = scmp.eq.s32.totalorder %s14, 3
    %p116 = scmp.ne.s32.totalorder %s111, %s113
    %p117 = scmp.eq.s32.totalorder %s14, 0
    %p118 = por %p116, %p117
    %p119 = scmp.ne.s32.totalorder %s111, %s113
    %p120 = scmp.eq.s32.totalorder %s19, 3
    %p121 = por %p119, %p120
    %p122 = scmp.ne.s32.totalorder %s113, %s114
    %p123 = scmp.eq.s32.totalorder %s19, 0
    %p124 = por %p122, %p123
    %p125 = scmp.ne.s32.totalorder %s113, %s114
    %p126 = scmp.eq.s32.totalorder %s20, 3
    %p127 = por %p125, %p126
    %p129 = scmp.ne.s32.totalorder %s114, %s128
    %p130 = scmp.eq.s32.totalorder %s20, 0
    %p131 = por %p129, %p130
    %s133 = sadd.s32 %s132, 1
    %p136 = scmp.eq.s32.totalorder %s14, 3
    %p137 = scmp.ne.s32.totalorder %s132, %s134
    %p138 = scmp.eq.s32.totalorder %s14, 0
    %p139 = por %p137, %p138
    %p140 = scmp.ne.s32.totalorder %s132, %s134
    %p141 = scmp.eq.s32.totalorder %s19, 3
    %p142 = por %p140, %p141
    %p143 = scmp.ne.s32.totalorder %s134, %s135
    %p144 = scmp.eq.s32.totalorder %s19, 0
    %p145 = por %p143, %p144
    %p146 = scmp.ne.s32.totalorder %s134, %s135
    %p147 = scmp.eq.s32.totalorder %s20, 3
    %p148 = por %p146, %p147
    %p150 = scmp.ne.s32.totalorder %s135, %s149
    %p151 = scmp.eq.s32.totalorder %s20, 0
    %p152 = por %p150, %p151
    %s154 = sadd.s32 %s153, 1
    %p157 = scmp.eq.s32.totalorder %s14, 3
    %p158 = scmp.ne.s32.totalorder %s153, %s155
    %p159 = scmp.eq.s32.totalorder %s14, 0
    %p160 = por %p158, %p159
    %p161 = scmp.ne.s32.totalorder %s153, %s155
    %p162 = scmp.eq.s32.totalorder %s19, 3
    %p163 = por %p161, %p162
    %p164 = scmp.ne.s32.totalorder %s155, %s156
    %p165 = scmp.eq.s32.totalorder %s19, 0
    %p166 = por %p164, %p165
    %p167 = scmp.ne.s32.totalorder %s155, %s156
    %p168 = scmp.eq.s32.totalorder %s20, 3
    %p169 = por %p167, %p168
    %p171 = scmp.ne.s32.totalorder %s156, %s170
    %p172 = scmp.eq.s32.totalorder %s20, 0
    %p173 = por %p171, %p172
    %s174 = ssub.s32 %s21, %s33
    %s175 = ssub.s32 %s22, %s29
    %s176 = sor.u32 %s174, %s175
    %p177 = scmp.eq.s32.totalorder %s176, 0
    %s179 = sadd.s32 %s178, 1
    %s180 = scalar_select %p177, %s178, %s179
    %p183 = pneg %p177
    %p184 = scmp.eq.s32.totalorder %s14, 3
    %p185 = por %p183, %p184
    %p186 = scmp.ne.s32.totalorder %s178, %s181
    %p187 = scmp.eq.s32.totalorder %s14, 0
    %p188 = por %p186, %p187
    %p189 = scmp.ne.s32.totalorder %s178, %s181
    %p190 = scmp.eq.s32.totalorder %s19, 3
    %p191 = por %p189, %p190
    %p192 = scmp.ne.s32.totalorder %s181, %s182
    %p193 = scmp.eq.s32.totalorder %s19, 0
    %p194 = por %p192, %p193
    %p195 = scmp.ne.s32.totalorder %s181, %s182
    %p196 = scmp.eq.s32.totalorder %s20, 3
    %p197 = por %p195, %p196
    %p199 = scmp.ne.s32.totalorder %s182, %s198
    %p200 = scmp.eq.s32.totalorder %s20, 0
    %p201 = por %p199, %p200
    %s202 = ssub.s32 %s21, %s33
    %s203 = ssub.s32 %s22, %s29
    %s204 = sor.u32 %s202, %s203
    %p205 = scmp.eq.s32.totalorder %s204, 0
    %s207 = sadd.s32 %s206, 1
    %s208 = scalar_select %p205, %s206, %s207
    %p211 = pneg %p205
    %p212 = scmp.eq.s32.totalorder %s14, 3
    %p213 = por %p211, %p212
    %p214 = scmp.ne.s32.totalorder %s206, %s209
    %p215 = scmp.eq.s32.totalorder %s14, 0
    %p216 = por %p214, %p215
    %p217 = scmp.ne.s32.totalorder %s206, %s209
    %p218 = scmp.eq.s32.totalorder %s19, 3
    %p219 = por %p217, %p218
    %p220 = scmp.ne.s32.totalorder %s209, %s210
    %p221 = scmp.eq.s32.totalorder %s19, 0
    %p222 = por %p220, %p221
    %p223 = scmp.ne.s32.totalorder %s209, %s210
    %p224 = scmp.eq.s32.totalorder %s20, 3
    %p225 = por %p223, %p224
    %p227 = scmp.ne.s32.totalorder %s210, %s226
    %p228 = scmp.eq.s32.totalorder %s20, 0
    %p229 = por %p227, %p228
    %p230 = scmp.le.s32.totalorder 1, %s14
    %p231 = scmp.lt.s32.totalorder %s14, 5
    %p232 = pnand %p230, %p231
    %p233 = pneg %p232
    // Predicated region
    $region9: #{_lambda_.3} parent=5 // pred_check
      _
    $region10: #{_lambda_.3} parent=5 // pred_check_branch
      %235 = sbr.rel (%p232) target = $region12
    $region11: #{_lambda_.3} parent=5 // pred_region
      %s236 = ssub.s32 %s14, 1
      // Predicated region
      $region13: #{_lambda_.3} parent=11 // pred_check
        %p237 = pneg %p103
      $region14: #{_lambda_.3} parent=11 // pred_check_branch
        %239 = sbr.rel (%p237) target = $region16
      $region15: #{_lambda_.3} parent=11 // pred_region
        _
      $region16: #{_lambda_.3} parent=11 // pred_fallthru
        _
      // Predicated region
      $region17: #{_lambda_.3} parent=11 // pred_check
        %p240 = pneg %p124
      $region18: #{_lambda_.3} parent=11 // pred_check_branch
        %242 = sbr.rel (%p240) target = $region20
      $region19: #{_lambda_.3} parent=11 // pred_region
        _
      $region20: #{_lambda_.3} parent=11 // pred_fallthru
        _
      // Predicated region
      $region21: #{_lambda_.3} parent=11 // pred_check
        %p243 = pneg %p145
      $region22: #{_lambda_.3} parent=11 // pred_check_branch
        %245 = sbr.rel (%p243) target = $region24
      $region23: #{_lambda_.3} parent=11 // pred_region
        _
      $region24: #{_lambda_.3} parent=11 // pred_fallthru
        _
      // Predicated region
      $region25: #{_lambda_.3} parent=11 // pred_check
        %p246 = pneg %p166
      $region26: #{_lambda_.3} parent=11 // pred_check_branch
        %248 = sbr.rel (%p246) target = $region28
      $region27: #{_lambda_.3} parent=11 // pred_region
        _
      $region28: #{_lambda_.3} parent=11 // pred_fallthru
        _
    $region12: #{_lambda_.3} parent=5 // pred_fallthru
      _
    %p249 = scmp.lt.s32.totalorder %s14, 4
    // Predicated region
    $region29: #{_lambda_.3} parent=5 // pred_check
      %p250 = pneg %p249
    $region30: #{_lambda_.3} parent=5 // pred_check_branch
      %252 = sbr.rel (%p250) target = $region32
    $region31: #{_lambda_.3} parent=5 // pred_region
      // Predicated region
      $region33: #{_lambda_.3} parent=31 // pred_check
        %p253 = pneg %p48
      $region34: #{_lambda_.3} parent=31 // pred_check_branch
        %255 = sbr.rel (%p253) target = $region36
      $region35: #{_lambda_.3} parent=31 // pred_region
        %s256 = smul.u32 16, %s22
        %p257 = scmp.lt.s32.totalorder %s21, 1
        %s258 = scalar_select %p257, %s21, 1
        %p259 = scmp.lt.s32.totalorder %s256, 31
        %s260 = scalar_select %p259, %s256, 31
        %s261 = smul.addr %s258, 32
        %s262 = sadd.s32 %s260, %s261
        %s263 = smul.addr %s262, 4
        %s264 = scalar_lea.vmem %s0, %s263
        %s265 = smul.u32 16, %s22
      $region36: #{_lambda_.3} parent=31 // pred_fallthru
        _
      // Predicated region
      $region37: #{_lambda_.3} parent=31 // pred_check
        %p266 = pneg %p76
      $region38: #{_lambda_.3} parent=31 // pred_check_branch
        %268 = sbr.rel (%p266) target = $region40
      $region39: #{_lambda_.3} parent=31 // pred_region
        %s269 = smul.u32 16, %s22
        %p270 = scmp.lt.s32.totalorder %s21, 1
        %s271 = scalar_select %p270, %s21, 1
        %p272 = scmp.lt.s32.totalorder %s269, 31
        %s273 = scalar_select %p272, %s269, 31
        %s274 = smul.addr %s271, 32
        %s275 = sadd.s32 %s273, %s274
        %s276 = smul.addr %s275, 4
        %s277 = scalar_lea.vmem %s1, %s276
        %s278 = smul.u32 16, %s22
      $region40: #{_lambda_.3} parent=31 // pred_fallthru
        _
    $region32: #{_lambda_.3} parent=5 // pred_fallthru
      _
    %p279 = scmp.le.s32.totalorder 1, %s14
    %p280 = scmp.lt.s32.totalorder %s14, 5
    %p281 = pnand %p279, %p280
    %p282 = pneg %p281
    // Predicated region
    $region41: #{_lambda_.3} parent=5 // pred_check
      _
    $region42: #{_lambda_.3} parent=5 // pred_check_branch
      %284 = sbr.rel (%p281) target = $region44
    $region43: #{_lambda_.3} parent=5 // pred_region
      %s285 = ssub.s32 %s14, 1
      %s286 = smul.u32 16, %s24
      %p287 = scmp.lt.s32.totalorder %s23, 1
      %s288 = scalar_select %p287, %s23, 1
      %p289 = scmp.lt.s32.totalorder %s286, 31
      %s290 = scalar_select %p289, %s286, 31
      %s291 = smul.addr %s288, 32
      %s292 = sadd.s32 %s290, %s291
      %s293 = smul.addr %s292, 4
      %s294 = scalar_lea.vmem %s0, %s293
      %p295 = pneg %p54
      %p296 = pneg %p51
      %s297 = smul.u32 16, %s24
      %p298 = scmp.lt.s32.totalorder %s23, 1
      %s299 = scalar_select %p298, %s23, 1
      %p300 = scmp.lt.s32.totalorder %s297, 31
      %s301 = scalar_select %p300, %s297, 31
      %s302 = smul.addr %s299, 32
      %s303 = sadd.s32 %s301, %s302
      %s304 = smul.addr %s303, 4
      %s305 = scalar_lea.vmem %s1, %s304
      %p306 = pneg %p82
      %p307 = pneg %p79
      %p308 = pneg %p103
      %p309 = pneg %p100
      %p310 = pneg %p124
      %p311 = pneg %p121
      %p312 = pneg %p145
      %p313 = pneg %p142
      %p314 = pneg %p166
      %p315 = pneg %p163
      %p316 = pneg %p194
      %p317 = pneg %p191
      %s318 = smul.u32 16, %s24
      %p319 = scmp.lt.s32.totalorder %s23, 1
      %s320 = scalar_select %p319, %s23, 1
      %p321 = scmp.lt.s32.totalorder %s318, 31
      %s322 = scalar_select %p321, %s318, 31
      %s323 = smul.addr %s320, 32
      %s324 = sadd.s32 %s322, %s323
      %s325 = smul.addr %s324, 4
      %s326 = scalar_lea.vmem %s6, %s325
      %p327 = pneg %p222
      %p328 = pneg %p219
      %s329 = smul.u32 16, %s24
      %p330 = scmp.lt.s32.totalorder %s23, 1
      %s331 = scalar_select %p330, %s23, 1
      %p332 = scmp.lt.s32.totalorder %s329, 31
      %s333 = scalar_select %p332, %s329, 31
      %s334 = smul.addr %s331, 32
      %s335 = sadd.s32 %s333, %s334
      %s336 = smul.addr %s335, 8
      %s337 = scalar_lea.vmem %s7, %s336
      %s338 = smul.u32 16, %s24
      %p339 = scmp.lt.s32.totalorder %s23, 1
      %s340 = scalar_select %p339, %s23, 1
      %p341 = scmp.lt.s32.totalorder %s338, 31
      %s342 = scalar_select %p341, %s338, 31
      %s343 = smul.addr %s340, 32
      %s344 = sadd.s32 %s342, %s343
      %s345 = smul.addr %s344, 4
      %s346 = scalar_lea.vmem %s0, %s345
      %s347 = smul.u32 16, %s24
      %s348 = smul.u32 16, %s24
      %p349 = scmp.lt.s32.totalorder %s23, 1
      %s350 = scalar_select %p349, %s23, 1
      %p351 = scmp.lt.s32.totalorder %s348, 31
      %s352 = scalar_select %p351, %s348, 31
      %s353 = smul.addr %s350, 32
      %s354 = sadd.s32 %s352, %s353
      %s355 = smul.addr %s354, 4
      %s356 = scalar_lea.vmem %s1, %s355
      %s357 = smul.u32 16, %s24
      %s358 = smul.u32 16, %s24
      %p359 = scmp.lt.s32.totalorder %s23, 1
      %s360 = scalar_select %p359, %s23, 1
      %p361 = scmp.lt.s32.totalorder %s358, 31
      %s362 = scalar_select %p361, %s358, 31
      %s363 = smul.addr %s360, 32
      %s364 = sadd.s32 %s362, %s363
      %s365 = smul.addr %s364, 4
      %s366 = scalar_lea.vmem %s6, %s365
      %s367 = smul.u32 16, %s24
      %s368 = smul.u32 16, %s24
      %p369 = scmp.lt.s32.totalorder %s23, 1
      %s370 = scalar_select %p369, %s23, 1
      %p371 = scmp.lt.s32.totalorder %s368, 31
      %s372 = scalar_select %p371, %s368, 31
      %s373 = smul.addr %s370, 32
      %s374 = sadd.s32 %s372, %s373
      %s375 = smul.addr %s374, 8
      %s376 = scalar_lea.vmem %s7, %s375
      %s377 = smul.u32 16, %s24
      %v379 = vld [vmem:[%s346] sm:$0xf]
      %v380 = vld [vmem:[%s346 + $0x4] sm:$0xf]
      %v381 = vld [vmem:[%s346 + $0x8] sm:$0xf]
      %v382 = vld [vmem:[%s346 + $0xc] sm:$0xf]
      %v383 = vld [vmem:[%s346 + $0x10] sm:$0xf]
      %v384 = vld [vmem:[%s346 + $0x14] sm:$0xf]
      %v385 = vld [vmem:[%s346 + $0x18] sm:$0xf]
      %v386 = vld [vmem:[%s346 + $0x1c] sm:$0xf]
      %v387 = vld [vmem:[%s346 + $0x20] sm:$0xf]
      %v388 = vld [vmem:[%s346 + $0x24] sm:$0xf]
      %v389 = vld [vmem:[%s346 + $0x28] sm:$0xf]
      %v390 = vld [vmem:[%s346 + $0x2c] sm:$0xf]
      %v391 = vld [vmem:[%s346 + $0x30] sm:$0xf]
      %v392 = vld [vmem:[%s346 + $0x34] sm:$0xf]
      %v393 = vld [vmem:[%s346 + $0x38] sm:$0xf]
      %v394 = vld [vmem:[%s346 + $0x3c] sm:$0xf]
      %v395 = vld [vmem:[%s2] sm:$0xf]
      %v396 = vld [vmem:[%s2 + $0x4] sm:$0xf]
      %v397 = vld [vmem:[%s2 + $0x8] sm:$0xf]
      %v398 = vld [vmem:[%s2 + $0xc] sm:$0xf]
      %v399 = vld [vmem:[%s2 + $0x10] sm:$0x3]
      %v400 = vld [vmem:[%s3] sm:$0x1]
      %v402 = vlaneseq
      %v403 = vshrl.u32 %v402, 7
      %v404 = vsub.s32 0, %v403
      %v405 = vrot.slane %v400, %v404
      %v423 = vunpack.c.l.b16 %v379
      %v424 = vunpack.c.l.b16 %v380
      %v425 = vunpack.c.l.b16 %v381
      %v426 = vunpack.c.l.b16 %v382
      %v427 = vunpack.c.l.b16 %v383
      %v428 = vunpack.c.l.b16 %v384
      %v429 = vunpack.c.l.b16 %v385
      %v430 = vunpack.c.l.b16 %v386
      %v431 = vunpack.c.l.b16 %v387
      %v432 = vunpack.c.l.b16 %v388
      %v433 = vunpack.c.l.b16 %v389
      %v434 = vunpack.c.l.b16 %v390
      %v435 = vunpack.c.l.b16 %v391
      %v436 = vunpack.c.l.b16 %v392
      %v437 = vunpack.c.l.b16 %v393
      %v438 = vunpack.c.l.b16 %v394
      %v439 = vpack.c.b16 %v424, %v423
      %v440 = vpack.c.b16 %v426, %v425
      %v441 = vpack.c.b16 %v428, %v427
      %v442 = vpack.c.b16 %v430, %v429
      %v443 = vpack.c.b16 %v432, %v431
      %v444 = vpack.c.b16 %v434, %v433
      %v445 = vpack.c.b16 %v436, %v435
      %v446 = vpack.c.b16 %v438, %v437
      %v452 = vunpack.c.l.b16 %v395
      %v453 = vunpack.c.l.b16 %v396
      %v454 = vunpack.c.l.b16 %v397
      %v455 = vunpack.c.l.b16 %v398
      %v456 = vunpack.c.l.b16 %v399
      %v457 = vpack.c.b16 %v453, %v452
      %v458 = vpack.c.b16 %v455, %v454
      %v459 = vpack.c.b16 %v456, %v456
      %vm462 = vcmask 293888
      %v464 = vsel %vm462, %v439, 0
      %v467 = vsel %vm462, %v440, 0
      %v470 = vsel %vm462, %v441, 0
      %v473 = vsel %vm462, %v442, 0
      %v476 = vsel %vm462, %v443, 0
      %v479 = vsel %vm462, %v444, 0
      %v482 = vsel %vm462, %v445, 0
      %v485 = vsel %vm462, %v446, 0
      %vm487 = vcmask 1041408
      %v489 = vsel %vm487, %v459, 0
      %491 = vmatprep.subr.bf16.mxu0 0
      %492 = vmatpush1.bf16.msra.mxu0 0
      %493 = vmatprep.subr.bf16.mxu0 0
      %494 = vmatpush1.bf16.msra.mxu0 0
      %495 = vmatprep.subr.bf16.mxu0 0
      %496 = vmatpush1.bf16.msra.mxu0 0
      %497 = vmatprep.subr.bf16.mxu0 0
      %498 = vmatpush1.bf16.msra.mxu0 0
      %499 = vmatprep.subr.bf16.mxu0 0
      %500 = vmatpush1.bf16.msra.mxu0 0
      %501 = vmatprep.subr.bf16.mxu0 0
      %502 = vmatpush1.bf16.msra.mxu0 %v489
      %503 = vmatprep.subr.bf16.mxu0 0
      %504 = vmatpush1.bf16.msra.mxu0 %v458
      %505 = vmatprep.subr.bf16.mxu0 0
      %506 = vmatpush1.bf16.msra.mxu0 %v457
      %507 = vmatprep.subr.bf16.mxu0 0
      %508 = vmatpush2.bf16.msra.mxu0 0
      %509 = vmatprep.subr.bf16.mxu0 0
      %510 = vmatpush2.bf16.msra.mxu0 0
      %511 = vmatprep.subr.bf16.mxu0 0
      %512 = vmatpush2.bf16.msra.mxu0 0
      %513 = vmatprep.subr.bf16.mxu0 0
      %514 = vmatpush2.bf16.msra.mxu0 0
      %515 = vmatprep.subr.bf16.mxu0 0
      %516 = vmatpush2.bf16.msra.mxu0 0
      %517 = vmatprep.subr.bf16.mxu0 0
      %518 = vmatpush2.bf16.msra.mxu0 0
      %519 = vmatprep.subr.bf16.mxu0 0
      %520 = vmatpush2.bf16.msra.mxu0 0
      %521 = vmatprep.subr.bf16.mxu0 0
      %522 = vmatpush2.bf16.msra.mxu0 0
      %523 = vmatprep.mubr.bf16.mxu0 0
      %524 = vmatmul.mubr.bf16.gmra.mxu0 %v464
      %v525 = vpop.f32.mrf.mxu0
      %v526 = vadd.f32 %v405, %v525
      %v527 = vpop.f32.mrf.mxu0
      %v528 = vpop.f32.mrf.mxu0
      %v529 = vadd.f32 %v405, %v528
      %v530 = vpop.f32.mrf.mxu0
      %531 = vmatprep.mubr.bf16.mxu0 0
      %532 = vmatmul.mubr.bf16.gmra.mxu0 %v467
      %v533 = vpop.f32.mrf.mxu0
      %v534 = vadd.f32 %v405, %v533
      %v535 = vpop.f32.mrf.mxu0
      %v536 = vpop.f32.mrf.mxu0
      %v537 = vadd.f32 %v405, %v536
      %v538 = vpop.f32.mrf.mxu0
      %539 = vmatprep.mubr.bf16.mxu0 0
      %540 = vmatmul.mubr.bf16.gmra.mxu0 %v470
      %v541 = vpop.f32.mrf.mxu0
      %v542 = vadd.f32 %v405, %v541
      %v543 = vpop.f32.mrf.mxu0
      %v544 = vpop.f32.mrf.mxu0
      %v545 = vadd.f32 %v405, %v544
      %v546 = vpop.f32.mrf.mxu0
      %547 = vmatprep.mubr.bf16.mxu0 0
      %548 = vmatmul.mubr.bf16.gmra.mxu0 %v473
      %v549 = vpop.f32.mrf.mxu0
      %v550 = vadd.f32 %v405, %v549
      %v551 = vpop.f32.mrf.mxu0
      %v552 = vpop.f32.mrf.mxu0
      %v553 = vadd.f32 %v405, %v552
      %v554 = vpop.f32.mrf.mxu0
      %555 = vmatprep.mubr.bf16.mxu0 0
      %556 = vmatmul.mubr.bf16.gmra.mxu0 %v476
      %v557 = vpop.f32.mrf.mxu0
      %v558 = vadd.f32 %v405, %v557
      %v559 = vpop.f32.mrf.mxu0
      %v560 = vpop.f32.mrf.mxu0
      %v561 = vadd.f32 %v405, %v560
      %v562 = vpop.f32.mrf.mxu0
      %563 = vmatprep.mubr.bf16.mxu0 0
      %564 = vmatmul.mubr.bf16.gmra.mxu0 %v479
      %v565 = vpop.f32.mrf.mxu0
      %v566 = vadd.f32 %v405, %v565
      %v567 = vpop.f32.mrf.mxu0
      %v568 = vpop.f32.mrf.mxu0
      %v569 = vadd.f32 %v405, %v568
      %v570 = vpop.f32.mrf.mxu0
      %571 = vmatprep.mubr.bf16.mxu0 0
      %572 = vmatmul.mubr.bf16.gmra.mxu0 %v482
      %v573 = vpop.f32.mrf.mxu0
      %v574 = vadd.f32 %v405, %v573
      %v575 = vpop.f32.mrf.mxu0
      %v576 = vpop.f32.mrf.mxu0
      %v577 = vadd.f32 %v405, %v576
      %v578 = vpop.f32.mrf.mxu0
      %579 = vmatprep.mubr.bf16.mxu0 0
      %580 = vmatmul.mubr.bf16.gmra.mxu0 %v485
      %v581 = vpop.f32.mrf.mxu0
      %v582 = vadd.f32 %v405, %v581
      %v583 = vpop.f32.mrf.mxu0
      %v584 = vpop.f32.mrf.mxu0
      %v585 = vadd.f32 %v405, %v584
      %v586 = vpop.f32.mrf.mxu0
      %587 = vdwg.mxu0
      %v588 = vmax.f32 %v526, 0.0
      %v589 = vmax.f32 %v529, 0.0
      %v590 = vmax.f32 %v534, 0.0
      %v591 = vmax.f32 %v537, 0.0
      %v592 = vmax.f32 %v542, 0.0
      %v593 = vmax.f32 %v545, 0.0
      %v594 = vmax.f32 %v550, 0.0
      %v595 = vmax.f32 %v553, 0.0
      %v596 = vmax.f32 %v558, 0.0
      %v597 = vmax.f32 %v561, 0.0
      %v598 = vmax.f32 %v566, 0.0
      %v599 = vmax.f32 %v569, 0.0
      %v600 = vmax.f32 %v574, 0.0
      %v601 = vmax.f32 %v577, 0.0
      %v602 = vmax.f32 %v582, 0.0
      %v603 = vmax.f32 %v585, 0.0
      %v604 = vpack.c.bf16 %v589, %v588
      %v605 = vpack.c.bf16 %v591, %v590
      %v606 = vpack.c.bf16 %v593, %v592
      %v607 = vpack.c.bf16 %v595, %v594
      %v608 = vpack.c.bf16 %v597, %v596
      %v609 = vpack.c.bf16 %v599, %v598
      %v610 = vpack.c.bf16 %v601, %v600
      %v611 = vpack.c.bf16 %v603, %v602
      %v620 = vunpack.c.l.b16 %v604
      %v621 = vunpack.c.h.b16 %v604
      %v622 = vunpack.c.l.b16 %v605
      %v623 = vunpack.c.h.b16 %v605
      %v624 = vunpack.c.l.b16 %v606
      %v625 = vunpack.c.h.b16 %v606
      %v626 = vunpack.c.l.b16 %v607
      %v627 = vunpack.c.h.b16 %v607
      %v628 = vunpack.c.l.b16 %v608
      %v629 = vunpack.c.h.b16 %v608
      %v630 = vunpack.c.l.b16 %v609
      %v631 = vunpack.c.h.b16 %v609
      %v632 = vunpack.c.l.b16 %v610
      %v633 = vunpack.c.h.b16 %v610
      %v634 = vunpack.c.l.b16 %v611
      %v635 = vunpack.c.h.b16 %v611
      %v636 = vpack.c.b16 %v620, %v620
      %v637 = vpack.c.b16 %v621, %v621
      %v638 = vpack.c.b16 %v622, %v622
      %v639 = vpack.c.b16 %v623, %v623
      %v640 = vpack.c.b16 %v624, %v624
      %v641 = vpack.c.b16 %v625, %v625
      %v642 = vpack.c.b16 %v626, %v626
      %v643 = vpack.c.b16 %v627, %v627
      %v644 = vpack.c.b16 %v628, %v628
      %v645 = vpack.c.b16 %v629, %v629
      %v646 = vpack.c.b16 %v630, %v630
      %v647 = vpack.c.b16 %v631, %v631
      %v648 = vpack.c.b16 %v632, %v632
      %v649 = vpack.c.b16 %v633, %v633
      %v650 = vpack.c.b16 %v634, %v634
      %v651 = vpack.c.b16 %v635, %v635
      %vm668 = vcmask 60416
      %669 = vst.msk [vmem:[%s366] sm:$0xf] %vm668, %v636
      %670 = vst.msk [vmem:[%s366 + $0x4] sm:$0xf] %vm668, %v637
      %671 = vst.msk [vmem:[%s366 + $0x8] sm:$0xf] %vm668, %v638
      %672 = vst.msk [vmem:[%s366 + $0xc] sm:$0xf] %vm668, %v639
      %673 = vst.msk [vmem:[%s366 + $0x10] sm:$0xf] %vm668, %v640
      %674 = vst.msk [vmem:[%s366 + $0x14] sm:$0xf] %vm668, %v641
      %675 = vst.msk [vmem:[%s366 + $0x18] sm:$0xf] %vm668, %v642
      %676 = vst.msk [vmem:[%s366 + $0x1c] sm:$0xf] %vm668, %v643
      %677 = vst.msk [vmem:[%s366 + $0x20] sm:$0xf] %vm668, %v644
      %678 = vst.msk [vmem:[%s366 + $0x24] sm:$0xf] %vm668, %v645
      %679 = vst.msk [vmem:[%s366 + $0x28] sm:$0xf] %vm668, %v646
      %680 = vst.msk [vmem:[%s366 + $0x2c] sm:$0xf] %vm668, %v647
      %681 = vst.msk [vmem:[%s366 + $0x30] sm:$0xf] %vm668, %v648
      %682 = vst.msk [vmem:[%s366 + $0x34] sm:$0xf] %vm668, %v649
      %683 = vst.msk [vmem:[%s366 + $0x38] sm:$0xf] %vm668, %v650
      %684 = vst.msk [vmem:[%s366 + $0x3c] sm:$0xf] %vm668, %v651
      %v685 = vld [vmem:[%s356] sm:$0xf]
      %v686 = vld [vmem:[%s356 + $0x4] sm:$0xf]
      %v687 = vld [vmem:[%s356 + $0x8] sm:$0xf]
      %v688 = vld [vmem:[%s356 + $0xc] sm:$0xf]
      %v689 = vld [vmem:[%s356 + $0x10] sm:$0xf]
      %v690 = vld [vmem:[%s356 + $0x14] sm:$0xf]
      %v691 = vld [vmem:[%s356 + $0x18] sm:$0xf]
      %v692 = vld [vmem:[%s356 + $0x1c] sm:$0xf]
      %v693 = vld [vmem:[%s356 + $0x20] sm:$0xf]
      %v694 = vld [vmem:[%s356 + $0x24] sm:$0xf]
      %v695 = vld [vmem:[%s356 + $0x28] sm:$0xf]
      %v696 = vld [vmem:[%s356 + $0x2c] sm:$0xf]
      %v697 = vld [vmem:[%s356 + $0x30] sm:$0xf]
      %v698 = vld [vmem:[%s356 + $0x34] sm:$0xf]
      %v699 = vld [vmem:[%s356 + $0x38] sm:$0xf]
      %v700 = vld [vmem:[%s356 + $0x3c] sm:$0xf]
      %v701 = vld [vmem:[%s4] sm:$0x3]
      %v702 = vld [vmem:[%s5] sm:$0x1]
      %v704 = vlaneseq
      %v705 = vshrl.u32 %v704, 7
      %v706 = vsub.s32 0, %v705
      %v707 = vrot.slane %v702, %v706
      %v725 = vunpack.c.l.b16 %v685
      %v726 = vunpack.c.l.b16 %v686
      %v727 = vunpack.c.l.b16 %v687
      %v728 = vunpack.c.l.b16 %v688
      %v729 = vunpack.c.l.b16 %v689
      %v730 = vunpack.c.l.b16 %v690
      %v731 = vunpack.c.l.b16 %v691
      %v732 = vunpack.c.l.b16 %v692
      %v733 = vunpack.c.l.b16 %v693
      %v734 = vunpack.c.l.b16 %v694
      %v735 = vunpack.c.l.b16 %v695
      %v736 = vunpack.c.l.b16 %v696
      %v737 = vunpack.c.l.b16 %v697
      %v738 = vunpack.c.l.b16 %v698
      %v739 = vunpack.c.l.b16 %v699
      %v740 = vunpack.c.l.b16 %v700
      %v741 = vpack.c.b16 %v726, %v725
      %v742 = vpack.c.b16 %v728, %v727
      %v743 = vpack.c.b16 %v730, %v729
      %v744 = vpack.c.b16 %v732, %v731
      %v745 = vpack.c.b16 %v734, %v733
      %v746 = vpack.c.b16 %v736, %v735
      %v747 = vpack.c.b16 %v738, %v737
      %v748 = vpack.c.b16 %v740, %v739
      %vm749 = vcmask 31744
      %v751 = vsel %vm749, %v741, 0
      %v754 = vsel %vm749, %v742, 0
      %v757 = vsel %vm749, %v743, 0
      %v760 = vsel %vm749, %v744, 0
      %v763 = vsel %vm749, %v745, 0
      %v766 = vsel %vm749, %v746, 0
      %v769 = vsel %vm749, %v747, 0
      %v772 = vsel %vm749, %v748, 0
      %v775 = vsel %vm487, %v701, 0
      %777 = vmatprep.subr.bf16.mxu0 0
      %778 = vmatpush1.bf16.msra.mxu0 0
      %779 = vmatprep.subr.bf16.mxu0 0
      %780 = vmatpush1.bf16.msra.mxu0 0
      %781 = vmatprep.subr.bf16.mxu0 0
      %782 = vmatpush1.bf16.msra.mxu0 0
      %783 = vmatprep.subr.bf16.mxu0 0
      %784 = vmatpush1.bf16.msra.mxu0 0
      %785 = vmatprep.subr.bf16.mxu0 0
      %786 = vmatpush1.bf16.msra.mxu0 0
      %787 = vmatprep.subr.bf16.mxu0 0
      %788 = vmatpush1.bf16.msra.mxu0 0
      %789 = vmatprep.subr.bf16.mxu0 0
      %790 = vmatpush1.bf16.msra.mxu0 0
      %791 = vmatprep.subr.bf16.mxu0 0
      %792 = vmatpush1.bf16.msra.mxu0 %v775
      %793 = vmatprep.subr.bf16.mxu0 0
      %794 = vmatpush2.bf16.msra.mxu0 0
      %795 = vmatprep.subr.bf16.mxu0 0
      %796 = vmatpush2.bf16.msra.mxu0 0
      %797 = vmatprep.subr.bf16.mxu0 0
      %798 = vmatpush2.bf16.msra.mxu0 0
      %799 = vmatprep.subr.bf16.mxu0 0
      %800 = vmatpush2.bf16.msra.mxu0 0
      %801 = vmatprep.subr.bf16.mxu0 0
      %802 = vmatpush2.bf16.msra.mxu0 0
      %803 = vmatprep.subr.bf16.mxu0 0
      %804 = vmatpush2.bf16.msra.mxu0 0
      %805 = vmatprep.subr.bf16.mxu0 0
      %806 = vmatpush2.bf16.msra.mxu0 0
      %807 = vmatprep.subr.bf16.mxu0 0
      %808 = vmatpush2.bf16.msra.mxu0 0
      %809 = vmatprep.mubr.bf16.mxu0 0
      %810 = vmatmul.mubr.bf16.gmra.mxu0 %v751
      %v811 = vpop.f32.mrf.mxu0
      %v812 = vadd.f32 %v707, %v811
      %v813 = vpop.f32.mrf.mxu0
      %v814 = vpop.f32.mrf.mxu0
      %v815 = vadd.f32 %v707, %v814
      %v816 = vpop.f32.mrf.mxu0
      %817 = vmatprep.mubr.bf16.mxu0 0
      %818 = vmatmul.mubr.bf16.gmra.mxu0 %v754
      %v819 = vpop.f32.mrf.mxu0
      %v820 = vadd.f32 %v707, %v819
      %v821 = vpop.f32.mrf.mxu0
      %v822 = vpop.f32.mrf.mxu0
      %v823 = vadd.f32 %v707, %v822
      %v824 = vpop.f32.mrf.mxu0
      %825 = vmatprep.mubr.bf16.mxu0 0
      %826 = vmatmul.mubr.bf16.gmra.mxu0 %v757
      %v827 = vpop.f32.mrf.mxu0
      %v828 = vadd.f32 %v707, %v827
      %v829 = vpop.f32.mrf.mxu0
      %v830 = vpop.f32.mrf.mxu0
      %v831 = vadd.f32 %v707, %v830
      %v832 = vpop.f32.mrf.mxu0
      %833 = vmatprep.mubr.bf16.mxu0 0
      %834 = vmatmul.mubr.bf16.gmra.mxu0 %v760
      %v835 = vpop.f32.mrf.mxu0
      %v836 = vadd.f32 %v707, %v835
      %v837 = vpop.f32.mrf.mxu0
      %v838 = vpop.f32.mrf.mxu0
      %v839 = vadd.f32 %v707, %v838
      %v840 = vpop.f32.mrf.mxu0
      %841 = vmatprep.mubr.bf16.mxu0 0
      %842 = vmatmul.mubr.bf16.gmra.mxu0 %v763
      %v843 = vpop.f32.mrf.mxu0
      %v844 = vadd.f32 %v707, %v843
      %v845 = vpop.f32.mrf.mxu0
      %v846 = vpop.f32.mrf.mxu0
      %v847 = vadd.f32 %v707, %v846
      %v848 = vpop.f32.mrf.mxu0
      %849 = vmatprep.mubr.bf16.mxu0 0
      %850 = vmatmul.mubr.bf16.gmra.mxu0 %v766
      %v851 = vpop.f32.mrf.mxu0
      %v852 = vadd.f32 %v707, %v851
      %v853 = vpop.f32.mrf.mxu0
      %v854 = vpop.f32.mrf.mxu0
      %v855 = vadd.f32 %v707, %v854
      %v856 = vpop.f32.mrf.mxu0
      %857 = vmatprep.mubr.bf16.mxu0 0
      %858 = vmatmul.mubr.bf16.gmra.mxu0 %v769
      %v859 = vpop.f32.mrf.mxu0
      %v860 = vadd.f32 %v707, %v859
      %v861 = vpop.f32.mrf.mxu0
      %v862 = vpop.f32.mrf.mxu0
      %v863 = vadd.f32 %v707, %v862
      %v864 = vpop.f32.mrf.mxu0
      %865 = vmatprep.mubr.bf16.mxu0 0
      %866 = vmatmul.mubr.bf16.gmra.mxu0 %v772
      %v867 = vpop.f32.mrf.mxu0
      %v868 = vadd.f32 %v707, %v867
      %v869 = vpop.f32.mrf.mxu0
      %v870 = vpop.f32.mrf.mxu0
      %v871 = vadd.f32 %v707, %v870
      %v872 = vpop.f32.mrf.mxu0
      %873 = vdwg.mxu0
      %vm874 = vcmask 64512
      %875 = vst.msk [vmem:[%s376] sm:$0xff] %vm874, %v812
      %876 = vst.msk [vmem:[%s376 + $0x8] sm:$0xff] %vm874, %v815
      %877 = vst.msk [vmem:[%s376 + $0x10] sm:$0xff] %vm874, %v820
      %878 = vst.msk [vmem:[%s376 + $0x18] sm:$0xff] %vm874, %v823
      %879 = vst.msk [vmem:[%s376 + $0x20] sm:$0xff] %vm874, %v828
      %880 = vst.msk [vmem:[%s376 + $0x28] sm:$0xff] %vm874, %v831
      %881 = vst.msk [vmem:[%s376 + $0x30] sm:$0xff] %vm874, %v836
      %882 = vst.msk [vmem:[%s376 + $0x38] sm:$0xff] %vm874, %v839
      %883 = vst.msk [vmem:[%s376 + $0x40] sm:$0xff] %vm874, %v844
      %884 = vst.msk [vmem:[%s376 + $0x48] sm:$0xff] %vm874, %v847
      %885 = vst.msk [vmem:[%s376 + $0x50] sm:$0xff] %vm874, %v852
      %886 = vst.msk [vmem:[%s376 + $0x58] sm:$0xff] %vm874, %v855
      %887 = vst.msk [vmem:[%s376 + $0x60] sm:$0xff] %vm874, %v860
      %888 = vst.msk [vmem:[%s376 + $0x68] sm:$0xff] %vm874, %v863
      %889 = vst.msk [vmem:[%s376 + $0x70] sm:$0xff] %vm874, %v868
      %890 = vst.msk [vmem:[%s376 + $0x78] sm:$0xff] %vm874, %v871
      %s891 = smul.u32 16, %s24
      %p892 = scmp.lt.s32.totalorder %s23, 1
      %s893 = scalar_select %p892, %s23, 1
      %p894 = scmp.lt.s32.totalorder %s891, 31
      %s895 = scalar_select %p894, %s891, 31
      %s896 = smul.addr %s893, 32
      %s897 = sadd.s32 %s895, %s896
      %s898 = smul.addr %s897, 4
      %s899 = scalar_lea.vmem %s6, %s898
      %s900 = smul.u32 16, %s24
      %p901 = scmp.lt.s32.totalorder %s23, 1
      %s902 = scalar_select %p901, %s23, 1
      %p903 = scmp.lt.s32.totalorder %s900, 31
      %s904 = scalar_select %p903, %s900, 31
      %s905 = smul.addr %s902, 32
      %s906 = sadd.s32 %s904, %s905
      %s907 = smul.addr %s906, 8
      %s908 = scalar_lea.vmem %s7, %s907
      // Predicated region
      $region45: #{_lambda_.3} parent=43 // pred_check
        %p909 = pneg %p191
      $region46: #{_lambda_.3} parent=43 // pred_check_branch
        %911 = sbr.rel (%p909) target = $region48
      $region47: #{_lambda_.3} parent=43 // pred_region
        %s912 = smul.u32 16, %s24
      $region48: #{_lambda_.3} parent=43 // pred_fallthru
        _
      // Predicated region
      $region49: #{_lambda_.3} parent=43 // pred_check
        %p913 = pneg %p219
      $region50: #{_lambda_.3} parent=43 // pred_check_branch
        %915 = sbr.rel (%p913) target = $region52
      $region51: #{_lambda_.3} parent=43 // pred_region
        %s916 = smul.u32 16, %s24
      $region52: #{_lambda_.3} parent=43 // pred_fallthru
        _
    $region44: #{_lambda_.3} parent=5 // pred_fallthru
      _
    %p917 = scmp.le.s32.totalorder 2, %s14
    // Predicated region
    $region53: #{_lambda_.3} parent=5 // pred_check
      %p918 = pneg %p917
    $region54: #{_lambda_.3} parent=5 // pred_check_branch
      %920 = sbr.rel (%p918) target = $region56
    $region55: #{_lambda_.3} parent=5 // pred_region
      %s921 = ssub.s32 %s14, 2
      // Predicated region
      $region57: #{_lambda_.3} parent=55 // pred_check
        %p922 = pneg %p197
      $region58: #{_lambda_.3} parent=55 // pred_check_branch
        %924 = sbr.rel (%p922) target = $region60
      $region59: #{_lambda_.3} parent=55 // pred_region
        %s925 = smul.u32 16, %s26
        %p926 = scmp.lt.s32.totalorder %s25, 1
        %s927 = scalar_select %p926, %s25, 1
        %p928 = scmp.lt.s32.totalorder %s925, 31
        %s929 = scalar_select %p928, %s925, 31
        %s930 = smul.addr %s927, 32
        %s931 = sadd.s32 %s929, %s930
        %s932 = smul.addr %s931, 4
        %s933 = scalar_lea.vmem %s6, %s932
      $region60: #{_lambda_.3} parent=55 // pred_fallthru
        _
      // Predicated region
      $region61: #{_lambda_.3} parent=55 // pred_check
        %p934 = pneg %p225
      $region62: #{_lambda_.3} parent=55 // pred_check_branch
        %936 = sbr.rel (%p934) target = $region64
      $region63: #{_lambda_.3} parent=55 // pred_region
        %s937 = smul.u32 16, %s26
        %p938 = scmp.lt.s32.totalorder %s25, 1
        %s939 = scalar_select %p938, %s25, 1
        %p940 = scmp.lt.s32.totalorder %s937, 31
        %s941 = scalar_select %p940, %s937, 31
        %s942 = smul.addr %s939, 32
        %s943 = sadd.s32 %s941, %s942
        %s944 = smul.addr %s943, 8
        %s945 = scalar_lea.vmem %s7, %s944
      $region64: #{_lambda_.3} parent=55 // pred_fallthru
        _
    $region56: #{_lambda_.3} parent=5 // pred_fallthru
      _
  $region6: #{_lambda_.3} parent=0 // loop_footer
    %s18 = sadd.s32 1, %s14
  $region7: #{_lambda_.3} parent=0 // loop_footer_branch
    %13 = sbr.rel target = $region3
  $region8: #{_lambda_.3} parent=0 // loop_exit
    _

// kernel: _lambda_.4
$region0: #{_lambda_.4}
  #allocation0 [shape = 'u32[]', space=smem, size = 0x4, offset = 0x4, fixed_abs, tag = 'smem constant byte address 0x4 - core index']
  #allocation1 [shape = 'u32[144,128]{1,0:T(1,128)}', space=vmem, size = 0x12000, scoped, tag = 'internal scratch']
  %s0 = inlined_call_operand.vmem [shape: bf16[2,256,72], index: 0, kind: input, shape index: {}]
  %s1 = inlined_call_operand.vmem [shape: f32[2,256,8], index: 1, kind: input, shape index: {}]
  %s2 = inlined_call_operand.vmem [shape: bf16[72,8], index: 2, kind: input, shape index: {}]
  %s3 = inlined_call_operand.vmem [shape: f32[1,8], index: 3, kind: input, shape index: {}]
  %s4 = inlined_call_operand.vmem [shape: f32[2,256,8], index: 4, kind: output, shape index: {0}]
  %s5 = inlined_call_operand.vmem [shape: f32[2,1,8], index: 5, kind: output, shape index: {1}]
  %6 = xla_tuple %s4, %s5
  %s7 = sld [smem:[#allocation0]]
  $region65: #{_lambda_.4} parent=0
    _
  %s9 = ssub.s32 1, %s7
  %s10 = scalar_select 0, %s9, %s7
  loop: start=0, step=1, limit=6
  $region2: #{_lambda_.4} parent=0 // loop_pre_header
    _
  $region3: #{_lambda_.4} parent=0 // loop_header
    %s12 = sphi 0, %s16
    %p13 = scmp.ge.s32.totalorder %s12, 6
    %s19 = sphi 0, %s31
    %s20 = sphi 0, %s27
    %s21 = sphi 0, %s19
    %s22 = sphi 0, %s20
    %s23 = sphi 0, %s21
    %s24 = sphi 0, %s22
    %s36 = sphi 0, %s38
    %s39 = sphi 0, %s36
    %s40 = sphi 0, %s39
    %s56 = sphi 0, %s40
    %s64 = sphi 0, %s66
    %s67 = sphi 0, %s64
    %s68 = sphi 0, %s67
    %s84 = sphi 0, %s68
    %s88 = sphi 0, %s88
    %s90 = sphi 0, %s88
    %s91 = sphi 0, %s90
    %s105 = sphi 0, %s91
    %s109 = sphi 0, %s109
    %s111 = sphi 0, %s109
    %s112 = sphi 0, %s111
    %s126 = sphi 0, %s112
    %s134 = sphi 0, %s136
    %s137 = sphi 0, %s134
    %s138 = sphi 0, %s137
    %s154 = sphi 0, %s138
    %s160 = sphi 0, %s162
    %s163 = sphi 0, %s160
    %s164 = sphi 0, %s163
    %s180 = sphi 0, %s164
  $region4: #{_lambda_.4} parent=0 // loop_header_branch
    %15 = sbr.rel (%p13) target = $region8
  $region5: #{_lambda_.4} parent=0 // loop_body
    %s17 = ssub.s32 %s12, 1
    %s18 = ssub.s32 %s12, 2
    %s25 = sadd.s32 1, %s20
    %p26 = scmp.ge.s32.totalorder %s25, 2
    %s27 = scalar_select %p26, 0, %s25
    %s28 = sadd.s32 1, %s19
    %s29 = scalar_select %p26, %s28, %s19
    %p30 = scmp.ge.s32.totalorder %s29, 2
    %s31 = scalar_select %p30, 0, %s29
    %s32 = ssub.s32 %s19, %s31
    %s33 = ssub.s32 %s20, %s27
    %s34 = sor.u32 %s32, %s33
    %p35 = scmp.eq.s32.totalorder %s34, 0
    %s37 = sadd.s32 %s36, 1
    %s38 = scalar_select %p35, %s36, %s37
    %p41 = pneg %p35
    %p42 = scmp.eq.s32.totalorder %s12, 3
    %p43 = por %p41, %p42
    %p44 = scmp.ne.s32.totalorder %s36, %s39
    %p45 = scmp.eq.s32.totalorder %s12, 0
    %p46 = por %p44, %p45
    %p47 = scmp.ne.s32.totalorder %s36, %s39
    %p48 = scmp.eq.s32.totalorder %s17, 3
    %p49 = por %p47, %p48
    %p50 = scmp.ne.s32.totalorder %s39, %s40
    %p51 = scmp.eq.s32.totalorder %s17, 0
    %p52 = por %p50, %p51
    %p53 = scmp.ne.s32.totalorder %s39, %s40
    %p54 = scmp.eq.s32.totalorder %s18, 3
    %p55 = por %p53, %p54
    %p57 = scmp.ne.s32.totalorder %s40, %s56
    %p58 = scmp.eq.s32.totalorder %s18, 0
    %p59 = por %p57, %p58
    %s60 = ssub.s32 %s19, %s31
    %s61 = ssub.s32 %s20, %s27
    %s62 = sor.u32 %s60, %s61
    %p63 = scmp.eq.s32.totalorder %s62, 0
    %s65 = sadd.s32 %s64, 1
    %s66 = scalar_select %p63, %s64, %s65
    %p69 = pneg %p63
    %p70 = scmp.eq.s32.totalorder %s12, 3
    %p71 = por %p69, %p70
    %p72 = scmp.ne.s32.totalorder %s64, %s67
    %p73 = scmp.eq.s32.totalorder %s12, 0
    %p74 = por %p72, %p73
    %p75 = scmp.ne.s32.totalorder %s64, %s67
    %p76 = scmp.eq.s32.totalorder %s17, 3
    %p77 = por %p75, %p76
    %p78 = scmp.ne.s32.totalorder %s67, %s68
    %p79 = scmp.eq.s32.totalorder %s17, 0
    %p80 = por %p78, %p79
    %p81 = scmp.ne.s32.totalorder %s67, %s68
    %p82 = scmp.eq.s32.totalorder %s18, 3
    %p83 = por %p81, %p82
    %p85 = scmp.ne.s32.totalorder %s68, %s84
    %p86 = scmp.eq.s32.totalorder %s18, 0
    %p87 = por %p85, %p86
    %s89 = sadd.s32 %s88, 1
    %p92 = scmp.eq.s32.totalorder %s12, 3
    %p93 = scmp.ne.s32.totalorder %s88, %s90
    %p94 = scmp.eq.s32.totalorder %s12, 0
    %p95 = por %p93, %p94
    %p96 = scmp.ne.s32.totalorder %s88, %s90
    %p97 = scmp.eq.s32.totalorder %s17, 3
    %p98 = por %p96, %p97
    %p99 = scmp.ne.s32.totalorder %s90, %s91
    %p100 = scmp.eq.s32.totalorder %s17, 0
    %p101 = por %p99, %p100
    %p102 = scmp.ne.s32.totalorder %s90, %s91
    %p103 = scmp.eq.s32.totalorder %s18, 3
    %p104 = por %p102, %p103
    %p106 = scmp.ne.s32.totalorder %s91, %s105
    %p107 = scmp.eq.s32.totalorder %s18, 0
    %p108 = por %p106, %p107
    %s110 = sadd.s32 %s109, 1
    %p113 = scmp.eq.s32.totalorder %s12, 3
    %p114 = scmp.ne.s32.totalorder %s109, %s111
    %p115 = scmp.eq.s32.totalorder %s12, 0
    %p116 = por %p114, %p115
    %p117 = scmp.ne.s32.totalorder %s109, %s111
    %p118 = scmp.eq.s32.totalorder %s17, 3
    %p119 = por %p117, %p118
    %p120 = scmp.ne.s32.totalorder %s111, %s112
    %p121 = scmp.eq.s32.totalorder %s17, 0
    %p122 = por %p120, %p121
    %p123 = scmp.ne.s32.totalorder %s111, %s112
    %p124 = scmp.eq.s32.totalorder %s18, 3
    %p125 = por %p123, %p124
    %p127 = scmp.ne.s32.totalorder %s112, %s126
    %p128 = scmp.eq.s32.totalorder %s18, 0
    %p129 = por %p127, %p128
    %s130 = ssub.s32 %s19, %s31
    %s131 = ssub.s32 %s20, %s27
    %s132 = sor.u32 %s130, %s131
    %p133 = scmp.eq.s32.totalorder %s132, 0
    %s135 = sadd.s32 %s134, 1
    %s136 = scalar_select %p133, %s134, %s135
    %p139 = pneg %p133
    %p140 = scmp.eq.s32.totalorder %s12, 3
    %p141 = por %p139, %p140
    %p142 = scmp.ne.s32.totalorder %s134, %s137
    %p143 = scmp.eq.s32.totalorder %s12, 0
    %p144 = por %p142, %p143
    %p145 = scmp.ne.s32.totalorder %s134, %s137
    %p146 = scmp.eq.s32.totalorder %s17, 3
    %p147 = por %p145, %p146
    %p148 = scmp.ne.s32.totalorder %s137, %s138
    %p149 = scmp.eq.s32.totalorder %s17, 0
    %p150 = por %p148, %p149
    %p151 = scmp.ne.s32.totalorder %s137, %s138
    %p152 = scmp.eq.s32.totalorder %s18, 3
    %p153 = por %p151, %p152
    %p155 = scmp.ne.s32.totalorder %s138, %s154
    %p156 = scmp.eq.s32.totalorder %s18, 0
    %p157 = por %p155, %p156
    %s158 = ssub.s32 %s19, %s31
    %p159 = scmp.eq.s32.totalorder %s158, 0
    %s161 = sadd.s32 %s160, 1
    %s162 = scalar_select %p159, %s160, %s161
    %p165 = pneg %p159
    %p166 = scmp.eq.s32.totalorder %s12, 3
    %p167 = por %p165, %p166
    %p168 = scmp.ne.s32.totalorder %s160, %s163
    %p169 = scmp.eq.s32.totalorder %s12, 0
    %p170 = por %p168, %p169
    %p171 = scmp.ne.s32.totalorder %s160, %s163
    %p172 = scmp.eq.s32.totalorder %s17, 3
    %p173 = por %p171, %p172
    %p174 = scmp.ne.s32.totalorder %s163, %s164
    %p175 = scmp.eq.s32.totalorder %s17, 0
    %p176 = por %p174, %p175
    %p177 = scmp.ne.s32.totalorder %s163, %s164
    %p178 = scmp.eq.s32.totalorder %s18, 3
    %p179 = por %p177, %p178
    %p181 = scmp.ne.s32.totalorder %s164, %s180
    %p182 = scmp.eq.s32.totalorder %s18, 0
    %p183 = por %p181, %p182
    %p184 = scmp.le.s32.totalorder 1, %s12
    %p185 = scmp.lt.s32.totalorder %s12, 5
    %p186 = pnand %p184, %p185
    %p187 = pneg %p186
    // Predicated region
    $region9: #{_lambda_.4} parent=5 // pred_check
      _
    $region10: #{_lambda_.4} parent=5 // pred_check_branch
      %189 = sbr.rel (%p186) target = $region12
    $region11: #{_lambda_.4} parent=5 // pred_region
      %s190 = ssub.s32 %s12, 1
      // Predicated region
      $region13: #{_lambda_.4} parent=11 // pred_check
        %p191 = pneg %p101
      $region14: #{_lambda_.4} parent=11 // pred_check_branch
        %193 = sbr.rel (%p191) target = $region16
      $region15: #{_lambda_.4} parent=11 // pred_region
        _
      $region16: #{_lambda_.4} parent=11 // pred_fallthru
        _
      // Predicated region
      $region17: #{_lambda_.4} parent=11 // pred_check
        %p194 = pneg %p122
      $region18: #{_lambda_.4} parent=11 // pred_check_branch
        %196 = sbr.rel (%p194) target = $region20
      $region19: #{_lambda_.4} parent=11 // pred_region
        _
      $region20: #{_lambda_.4} parent=11 // pred_fallthru
        _
    $region12: #{_lambda_.4} parent=5 // pred_fallthru
      _
    %p197 = scmp.lt.s32.totalorder %s12, 4
    // Predicated region
    $region21: #{_lambda_.4} parent=5 // pred_check
      %p198 = pneg %p197
    $region22: #{_lambda_.4} parent=5 // pred_check_branch
      %200 = sbr.rel (%p198) target = $region24
    $region23: #{_lambda_.4} parent=5 // pred_region
      // Predicated region
      $region25: #{_lambda_.4} parent=23 // pred_check
        %p201 = pneg %p46
      $region26: #{_lambda_.4} parent=23 // pred_check_branch
        %203 = sbr.rel (%p201) target = $region28
      $region27: #{_lambda_.4} parent=23 // pred_region
        %s204 = smul.u32 16, %s20
        %p205 = scmp.lt.s32.totalorder %s19, 1
        %s206 = scalar_select %p205, %s19, 1
        %p207 = scmp.lt.s32.totalorder %s204, 31
        %s208 = scalar_select %p207, %s204, 31
        %s209 = smul.addr %s206, 32
        %s210 = sadd.s32 %s208, %s209
        %s211 = smul.addr %s210, 4
        %s212 = scalar_lea.vmem %s0, %s211
        %s213 = smul.u32 16, %s20
      $region28: #{_lambda_.4} parent=23 // pred_fallthru
        _
      // Predicated region
      $region29: #{_lambda_.4} parent=23 // pred_check
        %p214 = pneg %p74
      $region30: #{_lambda_.4} parent=23 // pred_check_branch
        %216 = sbr.rel (%p214) target = $region32
      $region31: #{_lambda_.4} parent=23 // pred_region
        %s217 = smul.u32 16, %s20
        %p218 = scmp.lt.s32.totalorder %s19, 1
        %s219 = scalar_select %p218, %s19, 1
        %p220 = scmp.lt.s32.totalorder %s217, 31
        %s221 = scalar_select %p220, %s217, 31
        %s222 = smul.addr %s219, 32
        %s223 = sadd.s32 %s221, %s222
        %s224 = smul.addr %s223, 8
        %s225 = scalar_lea.vmem %s1, %s224
        %s226 = smul.u32 16, %s20
      $region32: #{_lambda_.4} parent=23 // pred_fallthru
        _
    $region24: #{_lambda_.4} parent=5 // pred_fallthru
      _
    %p227 = scmp.le.s32.totalorder 1, %s12
    %p228 = scmp.lt.s32.totalorder %s12, 5
    %p229 = pnand %p227, %p228
    %p230 = pneg %p229
    // Predicated region
    $region33: #{_lambda_.4} parent=5 // pred_check
      _
    $region34: #{_lambda_.4} parent=5 // pred_check_branch
      %232 = sbr.rel (%p229) target = $region36
    $region35: #{_lambda_.4} parent=5 // pred_region
      %s233 = ssub.s32 %s12, 1
      %s234 = smul.u32 16, %s22
      %p235 = scmp.lt.s32.totalorder %s21, 1
      %s236 = scalar_select %p235, %s21, 1
      %p237 = scmp.lt.s32.totalorder %s234, 31
      %s238 = scalar_select %p237, %s234, 31
      %s239 = smul.addr %s236, 32
      %s240 = sadd.s32 %s238, %s239
      %s241 = smul.addr %s240, 4
      %s242 = scalar_lea.vmem %s0, %s241
      %p243 = pneg %p52
      %p244 = pneg %p49
      %s245 = smul.u32 16, %s22
      %p246 = scmp.lt.s32.totalorder %s21, 1
      %s247 = scalar_select %p246, %s21, 1
      %p248 = scmp.lt.s32.totalorder %s245, 31
      %s249 = scalar_select %p248, %s245, 31
      %s250 = smul.addr %s247, 32
      %s251 = sadd.s32 %s249, %s250
      %s252 = smul.addr %s251, 8
      %s253 = scalar_lea.vmem %s1, %s252
      %p254 = pneg %p80
      %p255 = pneg %p77
      %p256 = pneg %p101
      %p257 = pneg %p98
      %p258 = pneg %p122
      %p259 = pneg %p119
      %p260 = pneg %p150
      %p261 = pneg %p147
      %s262 = smul.u32 16, %s22
      %p263 = scmp.lt.s32.totalorder %s21, 1
      %s264 = scalar_select %p263, %s21, 1
      %p265 = scmp.lt.s32.totalorder %s262, 31
      %s266 = scalar_select %p265, %s262, 31
      %s267 = smul.addr %s264, 32
      %s268 = sadd.s32 %s266, %s267
      %s269 = smul.addr %s268, 8
      %s270 = scalar_lea.vmem %s4, %s269
      %p271 = pneg %p176
      %p272 = pneg %p173
      %p273 = scmp.lt.s32.totalorder %s21, 1
      %s274 = scalar_select %p273, %s21, 1
      %s275 = scalar_lea.vmem %s5, %s274
      %s276 = smul.u32 16, %s22
      %p277 = scmp.lt.s32.totalorder %s21, 1
      %s278 = scalar_select %p277, %s21, 1
      %p279 = scmp.lt.s32.totalorder %s276, 31
      %s280 = scalar_select %p279, %s276, 31
      %s281 = smul.addr %s278, 32
      %s282 = sadd.s32 %s280, %s281
      %s283 = smul.addr %s282, 4
      %s284 = scalar_lea.vmem %s0, %s283
      %s285 = smul.u32 16, %s22
      %s286 = smul.u32 16, %s22
      %p287 = scmp.lt.s32.totalorder %s21, 1
      %s288 = scalar_select %p287, %s21, 1
      %p289 = scmp.lt.s32.totalorder %s286, 31
      %s290 = scalar_select %p289, %s286, 31
      %s291 = smul.addr %s288, 32
      %s292 = sadd.s32 %s290, %s291
      %s293 = smul.addr %s292, 8
      %s294 = scalar_lea.vmem %s1, %s293
      %s295 = smul.u32 16, %s22
      %s296 = smul.u32 16, %s22
      %p297 = scmp.lt.s32.totalorder %s21, 1
      %s298 = scalar_select %p297, %s21, 1
      %p299 = scmp.lt.s32.totalorder %s296, 31
      %s300 = scalar_select %p299, %s296, 31
      %s301 = smul.addr %s298, 32
      %s302 = sadd.s32 %s300, %s301
      %s303 = smul.addr %s302, 8
      %s304 = scalar_lea.vmem %s4, %s303
      %s305 = smul.u32 16, %s22
      %p306 = scmp.lt.s32.totalorder %s21, 1
      %s307 = scalar_select %p306, %s21, 1
      %s308 = scalar_lea.vmem %s5, %s307
      %v310 = vld [vmem:[%s284] sm:$0xf]
      %v311 = vld [vmem:[%s284 + $0x4] sm:$0xf]
      %v312 = vld [vmem:[%s284 + $0x8] sm:$0xf]
      %v313 = vld [vmem:[%s284 + $0xc] sm:$0xf]
      %v314 = vld [vmem:[%s284 + $0x10] sm:$0xf]
      %v315 = vld [vmem:[%s284 + $0x14] sm:$0xf]
      %v316 = vld [vmem:[%s284 + $0x18] sm:$0xf]
      %v317 = vld [vmem:[%s284 + $0x1c] sm:$0xf]
      %v318 = vld [vmem:[%s284 + $0x20] sm:$0xf]
      %v319 = vld [vmem:[%s284 + $0x24] sm:$0xf]
      %v320 = vld [vmem:[%s284 + $0x28] sm:$0xf]
      %v321 = vld [vmem:[%s284 + $0x2c] sm:$0xf]
      %v322 = vld [vmem:[%s284 + $0x30] sm:$0xf]
      %v323 = vld [vmem:[%s284 + $0x34] sm:$0xf]
      %v324 = vld [vmem:[%s284 + $0x38] sm:$0xf]
      %v325 = vld [vmem:[%s284 + $0x3c] sm:$0xf]
      %v326 = vld [vmem:[%s2] sm:$0xf]
      %v327 = vld [vmem:[%s2 + $0x4] sm:$0xf]
      %v328 = vld [vmem:[%s2 + $0x8] sm:$0xf]
      %v329 = vld [vmem:[%s2 + $0xc] sm:$0xf]
      %v330 = vld [vmem:[%s2 + $0x10] sm:$0xf]
      %v331 = vld [vmem:[%s2 + $0x14] sm:$0xf]
      %v332 = vld [vmem:[%s2 + $0x18] sm:$0xf]
      %v333 = vld [vmem:[%s2 + $0x1c] sm:$0xf]
      %v334 = vld [vmem:[%s2 + $0x20] sm:$0xf]
      %v335 = vld [vmem:[%s3] sm:$0x1]
      %v337 = vlaneseq
      %v338 = vshrl.u32 %v337, 7
      %v339 = vsub.s32 0, %v338
      %v340 = vrot.slane %v335, %v339
      %v358 = vunpack.c.l.b16 %v310
      %v359 = vunpack.c.l.b16 %v311
      %v360 = vunpack.c.l.b16 %v312
      %v361 = vunpack.c.l.b16 %v313
      %v362 = vunpack.c.l.b16 %v314
      %v363 = vunpack.c.l.b16 %v315
      %v364 = vunpack.c.l.b16 %v316
      %v365 = vunpack.c.l.b16 %v317
      %v366 = vunpack.c.l.b16 %v318
      %v367 = vunpack.c.l.b16 %v319
      %v368 = vunpack.c.l.b16 %v320
      %v369 = vunpack.c.l.b16 %v321
      %v370 = vunpack.c.l.b16 %v322
      %v371 = vunpack.c.l.b16 %v323
      %v372 = vunpack.c.l.b16 %v324
      %v373 = vunpack.c.l.b16 %v325
      %v374 = vpack.c.b16 %v359, %v358
      %v375 = vpack.c.b16 %v361, %v360
      %v376 = vpack.c.b16 %v363, %v362
      %v377 = vpack.c.b16 %v365, %v364
      %v378 = vpack.c.b16 %v367, %v366
      %v379 = vpack.c.b16 %v369, %v368
      %v380 = vpack.c.b16 %v371, %v370
      %v381 = vpack.c.b16 %v373, %v372
      %v391 = vunpack.c.l.b16 %v326
      %v392 = vunpack.c.l.b16 %v327
      %v393 = vunpack.c.l.b16 %v328
      %v394 = vunpack.c.l.b16 %v329
      %v395 = vunpack.c.l.b16 %v330
      %v396 = vunpack.c.l.b16 %v331
      %v397 = vunpack.c.l.b16 %v332
      %v398 = vunpack.c.l.b16 %v333
      %v399 = vunpack.c.l.b16 %v334
      %v400 = vpack.c.b16 %v392, %v391
      %v401 = vpack.c.b16 %v394, %v393
      %v402 = vpack.c.b16 %v396, %v395
      %v403 = vpack.c.b16 %v398, %v397
      %v404 = vpack.c.b16 %v399, %v399
      %vm409 = vcmask 588800
      %v411 = vsel %vm409, %v374, 0
      %v414 = vsel %vm409, %v375, 0
      %v417 = vsel %vm409, %v376, 0
      %v420 = vsel %vm409, %v377, 0
      %v423 = vsel %vm409, %v378, 0
      %v426 = vsel %vm409, %v379, 0
      %v429 = vsel %vm409, %v380, 0
      %v432 = vsel %vm409, %v381, 0
      %vm434 = vcmask 1043456
      %v436 = vsel %vm434, %v404, 0
      %438 = vmatprep.subr.bf16.mxu0 0
      %439 = vmatpush1.bf16.msra.mxu0 0
      %440 = vmatprep.subr.bf16.mxu0 0
      %441 = vmatpush1.bf16.msra.mxu0 0
      %442 = vmatprep.subr.bf16.mxu0 0
      %443 = vmatpush1.bf16.msra.mxu0 0
      %444 = vmatprep.subr.bf16.mxu0 0
      %445 = vmatpush1.bf16.msra.mxu0 %v436
      %446 = vmatprep.subr.bf16.mxu0 0
      %447 = vmatpush1.bf16.msra.mxu0 %v403
      %448 = vmatprep.subr.bf16.mxu0 0
      %449 = vmatpush1.bf16.msra.mxu0 %v402
      %450 = vmatprep.subr.bf16.mxu0 0
      %451 = vmatpush1.bf16.msra.mxu0 %v401
      %452 = vmatprep.subr.bf16.mxu0 0
      %453 = vmatpush1.bf16.msra.mxu0 %v400
      %454 = vmatprep.subr.bf16.mxu0 0
      %455 = vmatpush2.bf16.msra.mxu0 0
      %456 = vmatprep.subr.bf16.mxu0 0
      %457 = vmatpush2.bf16.msra.mxu0 0
      %458 = vmatprep.subr.bf16.mxu0 0
      %459 = vmatpush2.bf16.msra.mxu0 0
      %460 = vmatprep.subr.bf16.mxu0 0
      %461 = vmatpush2.bf16.msra.mxu0 0
      %462 = vmatprep.subr.bf16.mxu0 0
      %463 = vmatpush2.bf16.msra.mxu0 0
      %464 = vmatprep.subr.bf16.mxu0 0
      %465 = vmatpush2.bf16.msra.mxu0 0
      %466 = vmatprep.subr.bf16.mxu0 0
      %467 = vmatpush2.bf16.msra.mxu0 0
      %468 = vmatprep.subr.bf16.mxu0 0
      %469 = vmatpush2.bf16.msra.mxu0 0
      %470 = vmatprep.mubr.bf16.mxu0 0
      %471 = vmatmul.mubr.bf16.gmra.mxu0 %v411
      %v472 = vpop.f32.mrf.mxu0
      %v473 = vadd.f32 %v340, %v472
      %v474 = vpop.f32.mrf.mxu0
      %v475 = vpop.f32.mrf.mxu0
      %v476 = vadd.f32 %v340, %v475
      %v477 = vpop.f32.mrf.mxu0
      %478 = vmatprep.mubr.bf16.mxu0 0
      %479 = vmatmul.mubr.bf16.gmra.mxu0 %v414
      %v480 = vpop.f32.mrf.mxu0
      %v481 = vadd.f32 %v340, %v480
      %v482 = vpop.f32.mrf.mxu0
      %v483 = vpop.f32.mrf.mxu0
      %v484 = vadd.f32 %v340, %v483
      %v485 = vpop.f32.mrf.mxu0
      %486 = vmatprep.mubr.bf16.mxu0 0
      %487 = vmatmul.mubr.bf16.gmra.mxu0 %v417
      %v488 = vpop.f32.mrf.mxu0
      %v489 = vadd.f32 %v340, %v488
      %v490 = vpop.f32.mrf.mxu0
      %v491 = vpop.f32.mrf.mxu0
      %v492 = vadd.f32 %v340, %v491
      %v493 = vpop.f32.mrf.mxu0
      %494 = vmatprep.mubr.bf16.mxu0 0
      %495 = vmatmul.mubr.bf16.gmra.mxu0 %v420
      %v496 = vpop.f32.mrf.mxu0
      %v497 = vadd.f32 %v340, %v496
      %v498 = vpop.f32.mrf.mxu0
      %v499 = vpop.f32.mrf.mxu0
      %v500 = vadd.f32 %v340, %v499
      %v501 = vpop.f32.mrf.mxu0
      %502 = vmatprep.mubr.bf16.mxu0 0
      %503 = vmatmul.mubr.bf16.gmra.mxu0 %v423
      %v504 = vpop.f32.mrf.mxu0
      %v505 = vadd.f32 %v340, %v504
      %v506 = vpop.f32.mrf.mxu0
      %v507 = vpop.f32.mrf.mxu0
      %v508 = vadd.f32 %v340, %v507
      %v509 = vpop.f32.mrf.mxu0
      %510 = vmatprep.mubr.bf16.mxu0 0
      %511 = vmatmul.mubr.bf16.gmra.mxu0 %v426
      %v512 = vpop.f32.mrf.mxu0
      %v513 = vadd.f32 %v340, %v512
      %v514 = vpop.f32.mrf.mxu0
      %v515 = vpop.f32.mrf.mxu0
      %v516 = vadd.f32 %v340, %v515
      %v517 = vpop.f32.mrf.mxu0
      %518 = vmatprep.mubr.bf16.mxu0 0
      %519 = vmatmul.mubr.bf16.gmra.mxu0 %v429
      %v520 = vpop.f32.mrf.mxu0
      %v521 = vadd.f32 %v340, %v520
      %v522 = vpop.f32.mrf.mxu0
      %v523 = vpop.f32.mrf.mxu0
      %v524 = vadd.f32 %v340, %v523
      %v525 = vpop.f32.mrf.mxu0
      %526 = vmatprep.mubr.bf16.mxu0 0
      %527 = vmatmul.mubr.bf16.gmra.mxu0 %v432
      %v528 = vpop.f32.mrf.mxu0
      %v529 = vadd.f32 %v340, %v528
      %v530 = vpop.f32.mrf.mxu0
      %v531 = vpop.f32.mrf.mxu0
      %v532 = vadd.f32 %v340, %v531
      %v533 = vpop.f32.mrf.mxu0
      %534 = vdwg.mxu0
      %v535 = vld [vmem:[%s294] sm:$0xff]
      %v536 = vld [vmem:[%s294 + $0x8] sm:$0xff]
      %v537 = vld [vmem:[%s294 + $0x10] sm:$0xff]
      %v538 = vld [vmem:[%s294 + $0x18] sm:$0xff]
      %v539 = vld [vmem:[%s294 + $0x20] sm:$0xff]
      %v540 = vld [vmem:[%s294 + $0x28] sm:$0xff]
      %v541 = vld [vmem:[%s294 + $0x30] sm:$0xff]
      %v542 = vld [vmem:[%s294 + $0x38] sm:$0xff]
      %v543 = vld [vmem:[%s294 + $0x40] sm:$0xff]
      %v544 = vld [vmem:[%s294 + $0x48] sm:$0xff]
      %v545 = vld [vmem:[%s294 + $0x50] sm:$0xff]
      %v546 = vld [vmem:[%s294 + $0x58] sm:$0xff]
      %v547 = vld [vmem:[%s294 + $0x60] sm:$0xff]
      %v548 = vld [vmem:[%s294 + $0x68] sm:$0xff]
      %v549 = vld [vmem:[%s294 + $0x70] sm:$0xff]
      %v550 = vld [vmem:[%s294 + $0x78] sm:$0xff]
      %v551 = vadd.f32 %v473, %v535
      %v552 = vadd.f32 %v476, %v536
      %v553 = vadd.f32 %v481, %v537
      %v554 = vadd.f32 %v484, %v538
      %v555 = vadd.f32 %v489, %v539
      %v556 = vadd.f32 %v492, %v540
      %v557 = vadd.f32 %v497, %v541
      %v558 = vadd.f32 %v500, %v542
      %v559 = vadd.f32 %v505, %v543
      %v560 = vadd.f32 %v508, %v544
      %v561 = vadd.f32 %v513, %v545
      %v562 = vadd.f32 %v516, %v546
      %v563 = vadd.f32 %v521, %v547
      %v564 = vadd.f32 %v524, %v548
      %v565 = vadd.f32 %v529, %v549
      %v566 = vadd.f32 %v532, %v550
      %vm567 = vcmask 64512
      %568 = vst.msk [vmem:[%s304] sm:$0xff] %vm567, %v551
      %569 = vst.msk [vmem:[%s304 + $0x8] sm:$0xff] %vm567, %v552
      %570 = vst.msk [vmem:[%s304 + $0x10] sm:$0xff] %vm567, %v553
      %571 = vst.msk [vmem:[%s304 + $0x18] sm:$0xff] %vm567, %v554
      %572 = vst.msk [vmem:[%s304 + $0x20] sm:$0xff] %vm567, %v555
      %573 = vst.msk [vmem:[%s304 + $0x28] sm:$0xff] %vm567, %v556
      %574 = vst.msk [vmem:[%s304 + $0x30] sm:$0xff] %vm567, %v557
      %575 = vst.msk [vmem:[%s304 + $0x38] sm:$0xff] %vm567, %v558
      %576 = vst.msk [vmem:[%s304 + $0x40] sm:$0xff] %vm567, %v559
      %577 = vst.msk [vmem:[%s304 + $0x48] sm:$0xff] %vm567, %v560
      %578 = vst.msk [vmem:[%s304 + $0x50] sm:$0xff] %vm567, %v561
      %579 = vst.msk [vmem:[%s304 + $0x58] sm:$0xff] %vm567, %v562
      %580 = vst.msk [vmem:[%s304 + $0x60] sm:$0xff] %vm567, %v563
      %581 = vst.msk [vmem:[%s304 + $0x68] sm:$0xff] %vm567, %v564
      %582 = vst.msk [vmem:[%s304 + $0x70] sm:$0xff] %vm567, %v565
      %583 = vst.msk [vmem:[%s304 + $0x78] sm:$0xff] %vm567, %v566
      %v584 = vsel %vm567, %v551, 0.0
      %v585 = vsel %vm567, %v552, 0.0
      %v586 = vadd.f32 %v584, %v585
      %v587 = vsel %vm567, %v553, 0.0
      %v588 = vadd.f32 %v586, %v587
      %v589 = vsel %vm567, %v554, 0.0
      %v590 = vadd.f32 %v588, %v589
      %v591 = vsel %vm567, %v555, 0.0
      %v592 = vadd.f32 %v590, %v591
      %v593 = vsel %vm567, %v556, 0.0
      %v594 = vadd.f32 %v592, %v593
      %v595 = vsel %vm567, %v557, 0.0
      %v596 = vadd.f32 %v594, %v595
      %v597 = vsel %vm567, %v558, 0.0
      %v598 = vadd.f32 %v596, %v597
      %v599 = vsel %vm567, %v559, 0.0
      %v600 = vadd.f32 %v598, %v599
      %v601 = vsel %vm567, %v560, 0.0
      %v602 = vadd.f32 %v600, %v601
      %v603 = vsel %vm567, %v561, 0.0
      %v604 = vadd.f32 %v602, %v603
      %v605 = vsel %vm567, %v562, 0.0
      %v606 = vadd.f32 %v604, %v605
      %v607 = vsel %vm567, %v563, 0.0
      %v608 = vadd.f32 %v606, %v607
      %v609 = vsel %vm567, %v564, 0.0
      %v610 = vadd.f32 %v608, %v609
      %v611 = vsel %vm567, %v565, 0.0
      %v612 = vadd.f32 %v610, %v611
      %v613 = vsel %vm567, %v566, 0.0
      %v614 = vadd.f32 %v612, %v613
      %v615 = vrot.slane %v614, 4
      %v616 = vadd.f32 %v614, %v615
      %v617 = vrot.slane %v616, 2
      %v618 = vadd.f32 %v616, %v617
      %v619 = vrot.slane %v618, 1
      %v620 = vadd.f32 %v618, %v619
      %p621 = scmp.eq.s32.totalorder %s22, 0
      // Predicated region
      $region37: #{_lambda_.4} parent=35 // pred_check
        %p622 = pneg %p621
      $region38: #{_lambda_.4} parent=35 // pred_check_branch
        %624 = sbr.rel (%p622) target = $region40
      $region39: #{_lambda_.4} parent=35 // pred_region
        %vm625 = vcmask 57344
        %626 = vst.msk [vmem:[%s308] sm:$0x1] %vm625, %v620
      $region40: #{_lambda_.4} parent=35 // pred_fallthru
        _
      %p627 = scmp.ne.s32.totalorder %s22, 0
      // Predicated region
      $region41: #{_lambda_.4} parent=35 // pred_check
        %p628 = pneg %p627
      $region42: #{_lambda_.4} parent=35 // pred_check_branch
        %630 = sbr.rel (%p628) target = $region44
      $region43: #{_lambda_.4} parent=35 // pred_region
        %v631 = vld [vmem:[%s308] sm:$0x1]
        %v632 = vadd.f32 %v631, %v620
        %vm633 = vcmask 57344
        %634 = vst.msk [vmem:[%s308] sm:$0x1] %vm633, %v632
      $region44: #{_lambda_.4} parent=35 // pred_fallthru
        _
      %s635 = smul.u32 16, %s22
      %p636 = scmp.lt.s32.totalorder %s21, 1
      %s637 = scalar_select %p636, %s21, 1
      %p638 = scmp.lt.s32.totalorder %s635, 31
      %s639 = scalar_select %p638, %s635, 31
      %s640 = smul.addr %s637, 32
      %s641 = sadd.s32 %s639, %s640
      %s642 = smul.addr %s641, 8
      %s643 = scalar_lea.vmem %s4, %s642
      %p644 = scmp.lt.s32.totalorder %s21, 1
      %s645 = scalar_select %p644, %s21, 1
      %s646 = scalar_lea.vmem %s5, %s645
      // Predicated region
      $region45: #{_lambda_.4} parent=35 // pred_check
        %p647 = pneg %p147
      $region46: #{_lambda_.4} parent=35 // pred_check_branch
        %649 = sbr.rel (%p647) target = $region48
      $region47: #{_lambda_.4} parent=35 // pred_region
        %s650 = smul.u32 16, %s22
      $region48: #{_lambda_.4} parent=35 // pred_fallthru
        _
      // Predicated region
      $region49: #{_lambda_.4} parent=35 // pred_check
        %p651 = pneg %p173
      $region50: #{_lambda_.4} parent=35 // pred_check_branch
        %653 = sbr.rel (%p651) target = $region52
      $region51: #{_lambda_.4} parent=35 // pred_region
        _
      $region52: #{_lambda_.4} parent=35 // pred_fallthru
        _
    $region36: #{_lambda_.4} parent=5 // pred_fallthru
      _
    %p654 = scmp.le.s32.totalorder 2, %s12
    // Predicated region
    $region53: #{_lambda_.4} parent=5 // pred_check
      %p655 = pneg %p654
    $region54: #{_lambda_.4} parent=5 // pred_check_branch
      %657 = sbr.rel (%p655) target = $region56
    $region55: #{_lambda_.4} parent=5 // pred_region
      %s658 = ssub.s32 %s12, 2
      // Predicated region
      $region57: #{_lambda_.4} parent=55 // pred_check
        %p659 = pneg %p153
      $region58: #{_lambda_.4} parent=55 // pred_check_branch
        %661 = sbr.rel (%p659) target = $region60
      $region59: #{_lambda_.4} parent=55 // pred_region
        %s662 = smul.u32 16, %s24
        %p663 = scmp.lt.s32.totalorder %s23, 1
        %s664 = scalar_select %p663, %s23, 1
        %p665 = scmp.lt.s32.totalorder %s662, 31
        %s666 = scalar_select %p665, %s662, 31
        %s667 = smul.addr %s664, 32
        %s668 = sadd.s32 %s666, %s667
        %s669 = smul.addr %s668, 8
        %s670 = scalar_lea.vmem %s4, %s669
      $region60: #{_lambda_.4} parent=55 // pred_fallthru
        _
      // Predicated region
      $region61: #{_lambda_.4} parent=55 // pred_check
        %p671 = pneg %p179
      $region62: #{_lambda_.4} parent=55 // pred_check_branch
        %673 = sbr.rel (%p671) target = $region64
      $region63: #{_lambda_.4} parent=55 // pred_region
        %p674 = scmp.lt.s32.totalorder %s23, 1
        %s675 = scalar_select %p674, %s23, 1
        %s676 = scalar_lea.vmem %s5, %s675
      $region64: #{_lambda_.4} parent=55 // pred_fallthru
        _
    $region56: #{_lambda_.4} parent=5 // pred_fallthru
      _
  $region6: #{_lambda_.4} parent=0 // loop_footer
    %s16 = sadd.s32 1, %s12
  $region7: #{_lambda_.4} parent=0 // loop_footer_branch
    %11 = sbr.rel target = $region3
  $region8: #{_lambda_.4} parent=0 // loop_exit
    _

// kernel: _lambda_.5
$region0: #{_lambda_.5}
  #allocation0 [shape = 'u32[]', space=smem, size = 0x4, offset = 0x4, fixed_abs, tag = 'smem constant byte address 0x4 - core index']
  #allocation1 [shape = 'u32[144,128]{1,0:T(1,128)}', space=vmem, size = 0x12000, scoped, tag = 'internal scratch']
  %s0 = inlined_call_operand.vmem [shape: f32[2,256,8], index: 0, kind: input, shape index: {}]
  %s1 = inlined_call_operand.vmem [shape: f32[2,1,8], index: 1, kind: input, shape index: {}]
  %s2 = inlined_call_operand.vmem [shape: f32[2,256,8], index: 2, kind: output, shape index: {}]
  %s3 = sld [smem:[#allocation0]]
  $region41: #{_lambda_.5} parent=0
    _
  %s5 = ssub.s32 1, %s3
  %s6 = scalar_select 0, %s5, %s3
  loop: start=0, step=1, limit=6
  $region2: #{_lambda_.5} parent=0 // loop_pre_header
    _
  $region3: #{_lambda_.5} parent=0 // loop_header
    %s8 = sphi 0, %s12
    %p9 = scmp.ge.s32.totalorder %s8, 6
    %s15 = sphi 0, %s27
    %s16 = sphi 0, %s23
    %s17 = sphi 0, %s15
    %s18 = sphi 0, %s16
    %s19 = sphi 0, %s17
    %s20 = sphi 0, %s18
    %s32 = sphi 0, %s34
    %s35 = sphi 0, %s32
    %s36 = sphi 0, %s35
    %s52 = sphi 0, %s36
    %s58 = sphi 0, %s60
    %s61 = sphi 0, %s58
    %s62 = sphi 0, %s61
    %s78 = sphi 0, %s62
    %s86 = sphi 0, %s88
    %s89 = sphi 0, %s86
    %s90 = sphi 0, %s89
    %s106 = sphi 0, %s90
  $region4: #{_lambda_.5} parent=0 // loop_header_branch
    %11 = sbr.rel (%p9) target = $region8
  $region5: #{_lambda_.5} parent=0 // loop_body
    %s13 = ssub.s32 %s8, 1
    %s14 = ssub.s32 %s8, 2
    %s21 = sadd.s32 1, %s16
    %p22 = scmp.ge.s32.totalorder %s21, 2
    %s23 = scalar_select %p22, 0, %s21
    %s24 = sadd.s32 1, %s15
    %s25 = scalar_select %p22, %s24, %s15
    %p26 = scmp.ge.s32.totalorder %s25, 2
    %s27 = scalar_select %p26, 0, %s25
    %s28 = ssub.s32 %s15, %s27
    %s29 = ssub.s32 %s16, %s23
    %s30 = sor.u32 %s28, %s29
    %p31 = scmp.eq.s32.totalorder %s30, 0
    %s33 = sadd.s32 %s32, 1
    %s34 = scalar_select %p31, %s32, %s33
    %p37 = pneg %p31
    %p38 = scmp.eq.s32.totalorder %s8, 3
    %p39 = por %p37, %p38
    %p40 = scmp.ne.s32.totalorder %s32, %s35
    %p41 = scmp.eq.s32.totalorder %s8, 0
    %p42 = por %p40, %p41
    %p43 = scmp.ne.s32.totalorder %s32, %s35
    %p44 = scmp.eq.s32.totalorder %s13, 3
    %p45 = por %p43, %p44
    %p46 = scmp.ne.s32.totalorder %s35, %s36
    %p47 = scmp.eq.s32.totalorder %s13, 0
    %p48 = por %p46, %p47
    %p49 = scmp.ne.s32.totalorder %s35, %s36
    %p50 = scmp.eq.s32.totalorder %s14, 3
    %p51 = por %p49, %p50
    %p53 = scmp.ne.s32.totalorder %s36, %s52
    %p54 = scmp.eq.s32.totalorder %s14, 0
    %p55 = por %p53, %p54
    %s56 = ssub.s32 %s15, %s27
    %p57 = scmp.eq.s32.totalorder %s56, 0
    %s59 = sadd.s32 %s58, 1
    %s60 = scalar_select %p57, %s58, %s59
    %p63 = pneg %p57
    %p64 = scmp.eq.s32.totalorder %s8, 3
    %p65 = por %p63, %p64
    %p66 = scmp.ne.s32.totalorder %s58, %s61
    %p67 = scmp.eq.s32.totalorder %s8, 0
    %p68 = por %p66, %p67
    %p69 = scmp.ne.s32.totalorder %s58, %s61
    %p70 = scmp.eq.s32.totalorder %s13, 3
    %p71 = por %p69, %p70
    %p72 = scmp.ne.s32.totalorder %s61, %s62
    %p73 = scmp.eq.s32.totalorder %s13, 0
    %p74 = por %p72, %p73
    %p75 = scmp.ne.s32.totalorder %s61, %s62
    %p76 = scmp.eq.s32.totalorder %s14, 3
    %p77 = por %p75, %p76
    %p79 = scmp.ne.s32.totalorder %s62, %s78
    %p80 = scmp.eq.s32.totalorder %s14, 0
    %p81 = por %p79, %p80
    %s82 = ssub.s32 %s15, %s27
    %s83 = ssub.s32 %s16, %s23
    %s84 = sor.u32 %s82, %s83
    %p85 = scmp.eq.s32.totalorder %s84, 0
    %s87 = sadd.s32 %s86, 1
    %s88 = scalar_select %p85, %s86, %s87
    %p91 = pneg %p85
    %p92 = scmp.eq.s32.totalorder %s8, 3
    %p93 = por %p91, %p92
    %p94 = scmp.ne.s32.totalorder %s86, %s89
    %p95 = scmp.eq.s32.totalorder %s8, 0
    %p96 = por %p94, %p95
    %p97 = scmp.ne.s32.totalorder %s86, %s89
    %p98 = scmp.eq.s32.totalorder %s13, 3
    %p99 = por %p97, %p98
    %p100 = scmp.ne.s32.totalorder %s89, %s90
    %p101 = scmp.eq.s32.totalorder %s13, 0
    %p102 = por %p100, %p101
    %p103 = scmp.ne.s32.totalorder %s89, %s90
    %p104 = scmp.eq.s32.totalorder %s14, 3
    %p105 = por %p103, %p104
    %p107 = scmp.ne.s32.totalorder %s90, %s106
    %p108 = scmp.eq.s32.totalorder %s14, 0
    %p109 = por %p107, %p108
    %p110 = scmp.le.s32.totalorder 1, %s8
    %p111 = scmp.lt.s32.totalorder %s8, 5
    %p112 = pnand %p110, %p111
    %p113 = pneg %p112
    // Predicated region
    $region9: #{_lambda_.5} parent=5 // pred_check
      _
    $region10: #{_lambda_.5} parent=5 // pred_check_branch
      %115 = sbr.rel (%p112) target = $region12
    $region11: #{_lambda_.5} parent=5 // pred_region
      %s116 = ssub.s32 %s8, 1
    $region12: #{_lambda_.5} parent=5 // pred_fallthru
      _
    %p117 = scmp.lt.s32.totalorder %s8, 4
    // Predicated region
    $region13: #{_lambda_.5} parent=5 // pred_check
      %p118 = pneg %p117
    $region14: #{_lambda_.5} parent=5 // pred_check_branch
      %120 = sbr.rel (%p118) target = $region16
    $region15: #{_lambda_.5} parent=5 // pred_region
      // Predicated region
      $region17: #{_lambda_.5} parent=15 // pred_check
        %p121 = pneg %p42
      $region18: #{_lambda_.5} parent=15 // pred_check_branch
        %123 = sbr.rel (%p121) target = $region20
      $region19: #{_lambda_.5} parent=15 // pred_region
        %s124 = smul.u32 16, %s16
        %p125 = scmp.lt.s32.totalorder %s15, 1
        %s126 = scalar_select %p125, %s15, 1
        %p127 = scmp.lt.s32.totalorder %s124, 31
        %s128 = scalar_select %p127, %s124, 31
        %s129 = smul.addr %s126, 32
        %s130 = sadd.s32 %s128, %s129
        %s131 = smul.addr %s130, 8
        %s132 = scalar_lea.vmem %s0, %s131
        %s133 = smul.u32 16, %s16
      $region20: #{_lambda_.5} parent=15 // pred_fallthru
        _
      // Predicated region
      $region21: #{_lambda_.5} parent=15 // pred_check
        %p134 = pneg %p68
      $region22: #{_lambda_.5} parent=15 // pred_check_branch
        %136 = sbr.rel (%p134) target = $region24
      $region23: #{_lambda_.5} parent=15 // pred_region
        %p137 = scmp.lt.s32.totalorder %s15, 1
        %s138 = scalar_select %p137, %s15, 1
        %s139 = scalar_lea.vmem %s1, %s138
      $region24: #{_lambda_.5} parent=15 // pred_fallthru
        _
    $region16: #{_lambda_.5} parent=5 // pred_fallthru
      _
    %p140 = scmp.le.s32.totalorder 1, %s8
    %p141 = scmp.lt.s32.totalorder %s8, 5
    %p142 = pnand %p140, %p141
    %p143 = pneg %p142
    // Predicated region
    $region25: #{_lambda_.5} parent=5 // pred_check
      _
    $region26: #{_lambda_.5} parent=5 // pred_check_branch
      %145 = sbr.rel (%p142) target = $region28
    $region27: #{_lambda_.5} parent=5 // pred_region
      %s146 = ssub.s32 %s8, 1
      %s147 = smul.u32 16, %s18
      %p148 = scmp.lt.s32.totalorder %s17, 1
      %s149 = scalar_select %p148, %s17, 1
      %p150 = scmp.lt.s32.totalorder %s147, 31
      %s151 = scalar_select %p150, %s147, 31
      %s152 = smul.addr %s149, 32
      %s153 = sadd.s32 %s151, %s152
      %s154 = smul.addr %s153, 8
      %s155 = scalar_lea.vmem %s0, %s154
      %p156 = pneg %p48
      %p157 = pneg %p45
      %p158 = scmp.lt.s32.totalorder %s17, 1
      %s159 = scalar_select %p158, %s17, 1
      %s160 = scalar_lea.vmem %s1, %s159
      %p161 = pneg %p74
      %p162 = pneg %p71
      %p163 = pneg %p102
      %p164 = pneg %p99
      %s165 = smul.u32 16, %s18
      %p166 = scmp.lt.s32.totalorder %s17, 1
      %s167 = scalar_select %p166, %s17, 1
      %p168 = scmp.lt.s32.totalorder %s165, 31
      %s169 = scalar_select %p168, %s165, 31
      %s170 = smul.addr %s167, 32
      %s171 = sadd.s32 %s169, %s170
      %s172 = smul.addr %s171, 8
      %s173 = scalar_lea.vmem %s2, %s172
      %s174 = smul.u32 16, %s18
      %p175 = scmp.lt.s32.totalorder %s17, 1
      %s176 = scalar_select %p175, %s17, 1
      %p177 = scmp.lt.s32.totalorder %s174, 31
      %s178 = scalar_select %p177, %s174, 31
      %s179 = smul.addr %s176, 32
      %s180 = sadd.s32 %s178, %s179
      %s181 = smul.addr %s180, 8
      %s182 = scalar_lea.vmem %s0, %s181
      %s183 = smul.u32 16, %s18
      %p184 = scmp.lt.s32.totalorder %s17, 1
      %s185 = scalar_select %p184, %s17, 1
      %s186 = scalar_lea.vmem %s1, %s185
      %s187 = smul.u32 16, %s18
      %p188 = scmp.lt.s32.totalorder %s17, 1
      %s189 = scalar_select %p188, %s17, 1
      %p190 = scmp.lt.s32.totalorder %s187, 31
      %s191 = scalar_select %p190, %s187, 31
      %s192 = smul.addr %s189, 32
      %s193 = sadd.s32 %s191, %s192
      %s194 = smul.addr %s193, 8
      %s195 = scalar_lea.vmem %s2, %s194
      %s196 = smul.u32 16, %s18
      %v197 = vld [vmem:[%s182] sm:$0xff]
      %v198 = vld [vmem:[%s182 + $0x8] sm:$0xff]
      %v199 = vld [vmem:[%s182 + $0x10] sm:$0xff]
      %v200 = vld [vmem:[%s182 + $0x18] sm:$0xff]
      %v201 = vld [vmem:[%s182 + $0x20] sm:$0xff]
      %v202 = vld [vmem:[%s182 + $0x28] sm:$0xff]
      %v203 = vld [vmem:[%s182 + $0x30] sm:$0xff]
      %v204 = vld [vmem:[%s182 + $0x38] sm:$0xff]
      %v205 = vld [vmem:[%s182 + $0x40] sm:$0xff]
      %v206 = vld [vmem:[%s182 + $0x48] sm:$0xff]
      %v207 = vld [vmem:[%s182 + $0x50] sm:$0xff]
      %v208 = vld [vmem:[%s182 + $0x58] sm:$0xff]
      %v209 = vld [vmem:[%s182 + $0x60] sm:$0xff]
      %v210 = vld [vmem:[%s182 + $0x68] sm:$0xff]
      %v211 = vld [vmem:[%s182 + $0x70] sm:$0xff]
      %v212 = vld [vmem:[%s182 + $0x78] sm:$0xff]
      %v213 = vld [vmem:[%s186] sm:$0x1]
      %v215 = vlaneseq
      %v216 = vshrl.u32 %v215, 7
      %v217 = vsub.s32 0, %v216
      %v218 = vrot.slane %v213, %v217
      %v220 = vmul.f32 %v197, %v218
      %v221 = vmul.f32 %v198, %v218
      %v222 = vmul.f32 %v199, %v218
      %v223 = vmul.f32 %v200, %v218
      %v224 = vmul.f32 %v201, %v218
      %v225 = vmul.f32 %v202, %v218
      %v226 = vmul.f32 %v203, %v218
      %v227 = vmul.f32 %v204, %v218
      %v228 = vmul.f32 %v205, %v218
      %v229 = vmul.f32 %v206, %v218
      %v230 = vmul.f32 %v207, %v218
      %v231 = vmul.f32 %v208, %v218
      %v232 = vmul.f32 %v209, %v218
      %v233 = vmul.f32 %v210, %v218
      %v234 = vmul.f32 %v211, %v218
      %v235 = vmul.f32 %v212, %v218
      %vm236 = vcmask 64512
      %237 = vst.msk [vmem:[%s195] sm:$0xff] %vm236, %v220
      %238 = vst.msk [vmem:[%s195 + $0x8] sm:$0xff] %vm236, %v221
      %239 = vst.msk [vmem:[%s195 + $0x10] sm:$0xff] %vm236, %v222
      %240 = vst.msk [vmem:[%s195 + $0x18] sm:$0xff] %vm236, %v223
      %241 = vst.msk [vmem:[%s195 + $0x20] sm:$0xff] %vm236, %v224
      %242 = vst.msk [vmem:[%s195 + $0x28] sm:$0xff] %vm236, %v225
      %243 = vst.msk [vmem:[%s195 + $0x30] sm:$0xff] %vm236, %v226
      %244 = vst.msk [vmem:[%s195 + $0x38] sm:$0xff] %vm236, %v227
      %245 = vst.msk [vmem:[%s195 + $0x40] sm:$0xff] %vm236, %v228
      %246 = vst.msk [vmem:[%s195 + $0x48] sm:$0xff] %vm236, %v229
      %247 = vst.msk [vmem:[%s195 + $0x50] sm:$0xff] %vm236, %v230
      %248 = vst.msk [vmem:[%s195 + $0x58] sm:$0xff] %vm236, %v231
      %249 = vst.msk [vmem:[%s195 + $0x60] sm:$0xff] %vm236, %v232
      %250 = vst.msk [vmem:[%s195 + $0x68] sm:$0xff] %vm236, %v233
      %251 = vst.msk [vmem:[%s195 + $0x70] sm:$0xff] %vm236, %v234
      %252 = vst.msk [vmem:[%s195 + $0x78] sm:$0xff] %vm236, %v235
      %s253 = smul.u32 16, %s18
      %p254 = scmp.lt.s32.totalorder %s17, 1
      %s255 = scalar_select %p254, %s17, 1
      %p256 = scmp.lt.s32.totalorder %s253, 31
      %s257 = scalar_select %p256, %s253, 31
      %s258 = smul.addr %s255, 32
      %s259 = sadd.s32 %s257, %s258
      %s260 = smul.addr %s259, 8
      %s261 = scalar_lea.vmem %s2, %s260
      // Predicated region
      $region29: #{_lambda_.5} parent=27 // pred_check
        %p262 = pneg %p99
      $region30: #{_lambda_.5} parent=27 // pred_check_branch
        %264 = sbr.rel (%p262) target = $region32
      $region31: #{_lambda_.5} parent=27 // pred_region
        %s265 = smul.u32 16, %s18
      $region32: #{_lambda_.5} parent=27 // pred_fallthru
        _
    $region28: #{_lambda_.5} parent=5 // pred_fallthru
      _
    %p266 = scmp.le.s32.totalorder 2, %s8
    // Predicated region
    $region33: #{_lambda_.5} parent=5 // pred_check
      %p267 = pneg %p266
    $region34: #{_lambda_.5} parent=5 // pred_check_branch
      %269 = sbr.rel (%p267) target = $region36
    $region35: #{_lambda_.5} parent=5 // pred_region
      %s270 = ssub.s32 %s8, 2
      // Predicated region
      $region37: #{_lambda_.5} parent=35 // pred_check
        %p271 = pneg %p105
      $region38: #{_lambda_.5} parent=35 // pred_check_branch
        %273 = sbr.rel (%p271) target = $region40
      $region39: #{_lambda_.5} parent=35 // pred_region
        %s274 = smul.u32 16, %s20
        %p275 = scmp.lt.s32.totalorder %s19, 1
        %s276 = scalar_select %p275, %s19, 1
        %p277 = scmp.lt.s32.totalorder %s274, 31
        %s278 = scalar_select %p277, %s274, 31
        %s279 = smul.addr %s276, 32
        %s280 = sadd.s32 %s278, %s279
        %s281 = smul.addr %s280, 8
        %s282 = scalar_lea.vmem %s2, %s281
      $region40: #{_lambda_.5} parent=35 // pred_fallthru
        _
    $region36: #{_lambda_.5} parent=5 // pred_fallthru
      _
  $region6: #{_lambda_.5} parent=0 // loop_footer
    %s12 = sadd.s32 1, %s8
  $region7: #{_lambda_.5} parent=0 // loop_footer_branch
    %7 = sbr.rel target = $region3
  $region8: #{_lambda_.5} parent=0 // loop_exit
    _

</llo_original>
